<compile_context>
chip_gen: v7x
topology: tpu7x:2x2x1
jax: 0.10.0
libtpu: 0.0.40
codegen_flags: <defaults>
</compile_context>

<pallas_src>
import functools

import jax
import jax.numpy as jnp
from jax.experimental import pallas as pl
from jax.experimental.pallas import tpu as pltpu

IGNORE_INDEX = -100
SPECIAL_TOKEN_THRESHOLD = 32000   # hard-coded in the PyTorch module


def _ce_kernel(flags_ref, tgt_ref, cur_ref, picked_ref, lm_ref, sp_ref, out_ref,
               m_ref, s_ref, *, vocab_size, tv, need_mask):
    """Grid = (token_tiles, vocab_chunks); one step sees a (TM, TV) chunk of the
    lm (and, for flagged tiles, special) logits plus (TM, 1) label-side inputs."""
    i = pl.program_id(0)
    kv = pl.program_id(1)
    n_kv = pl.num_programs(1)

    @pl.when(kv == 0)
    def _():
        m_ref[...] = jnp.full(m_ref.shape, -jnp.inf, jnp.float32)  # running row max
        s_ref[...] = jnp.zeros(s_ref.shape, jnp.float32)           # running sum-exp

    def lse_update(x_raw):
        # narrow-dtype select happened upstream; cast to f32 for the math
        x = x_raw.astype(jnp.float32)                              # (TM, TV)
        if need_mask:
            # fallback only (tv does not divide V): mask the ragged vocab tail
            lane = jax.lax.broadcasted_iota(jnp.int32, (1, tv), 1)
            x = jnp.where(lane < (vocab_size - kv * tv), x, -jnp.inf)
        m_prev = m_ref[...]
        m_new = jnp.maximum(m_prev, jnp.max(x, axis=-1, keepdims=True))
        s_ref[...] = (s_ref[...] * jnp.exp(m_prev - m_new)
                      + jnp.sum(jnp.exp(x - m_new), axis=-1, keepdims=True))
        m_ref[...] = m_new

    has_special = flags_ref[i] != 0

    @pl.when(has_special)            # rare tile: per-row lm/special routing
    def _():
        lse_update(jnp.where(cur_ref[...] > SPECIAL_TOKEN_THRESHOLD,
                             sp_ref[...], lm_ref[...]))

    @pl.when(jnp.logical_not(has_special))   # common tile: lm only, no select
    def _():
        lse_update(lm_ref[...])

    @pl.when(kv == n_kv - 1)
    def _():
        # Rows beyond the real token count (trailing partial tile) hold stale
        # VMEM data, but their tgt was padded to IGNORE_INDEX so jnp.where drops
        # them even if lse is NaN/Inf.
        valid = tgt_ref[...] != IGNORE_INDEX                       # (TM, 1)
        lse = m_ref[...] + jnp.log(s_ref[...])
        per_tok = jnp.where(valid, lse - picked_ref[...], 0.0)
        loss_sum = jnp.sum(per_tok)
        tok_cnt = jnp.sum(valid.astype(jnp.float32))
        # lane-dense (1, 2, 128) partial: channel 0 = loss sum, channel 1 = count
        chan = jax.lax.broadcasted_iota(jnp.int32, out_ref.shape, 1)
        out_ref[...] = jnp.where(chan == 0, loss_sum, tok_cnt)


def _choose_vocab_chunk(vocab_size):
    """Pick a vocab chunk width.  Prefer a lane-aligned divisor of V so the
    ragged-tail mask is never needed; fall back to 4096 + in-kernel mask."""
    if vocab_size <= 8192:
        return vocab_size, False
    for n_chunks in range(pl.cdiv(vocab_size, 8192), vocab_size // 1024 + 1):
        tv = vocab_size // n_chunks
        if vocab_size % n_chunks == 0 and tv % 128 == 0:
            return tv, False
    return 4096, True


def _choose_tiles(n_tokens, vocab_size, itemsize):
    """Static (trace-time) tile selection with explicit VMEM accounting."""
    mult = 8 if itemsize >= 4 else 16          # sublane packing (f32 vs bf16)
    try:
        vmem_bytes = pltpu.get_tpu_info().vmem_capacity_bytes
    except Exception:
        vmem_bytes = 64 * 1024 * 1024          # conservative (v7x) fallback

    tv, need_mask = _choose_vocab_chunk(vocab_size)

    # Live bytes per tile element:
    #   2 logit operands x 2 pipeline buffers in their HBM dtype
    # + ~3 f32 tile-wide temporaries (routed/cast x, x - m, exp(x - m)).
    per_elem = 2 * 2 * itemsize + 3 * 4
    budget = vmem_bytes // 2                   # leave half for compiler scratch
    tm = max(mult, (budget // (tv * per_elem)) // mult * mult)
    tm = min(tm, 1024)

    # Ensure >= 2 token tiles so both v7x TensorCores get work (no cost on 1-TC
    # v5e/v6e parts).
    half = ((pl.cdiv(n_tokens, 2) + mult - 1) // mult) * mult
    tm = min(tm, max(mult, half))

    vmem_limit = min(int(vmem_bytes * 0.9), 120 * 1024 * 1024)
    return tm, tv, need_mask, vmem_limit


@functools.partial(jax.jit, static_argnames=("vocab_size",))
def bio0_autoregressive_criterion(output, label, *, vocab_size):
    """JAX/Pallas forward of Bio0AutoregressiveCriterion (reduction='mean').

    output: (lm_logits, special_logits), each (B, S, V)
    label:  (B, S) int labels (or a tuple/dict wrapping them, like the module)
    returns (loss_scalar, {})
    """
    # --- glue identical to the PyTorch module ---
    if isinstance(label, tuple):
        labels = label[0]
    elif isinstance(label, dict):
        labels = label["x"]
    else:
        labels = label
    lm_logits, special_logits = output

    b, s, v = lm_logits.shape
    assert v == vocab_size
    n = b * s

    lm2d = lm_logits.reshape(n, v)            # no copy, no pad, no dtype change
    sp2d = special_logits.reshape(n, v)

    labels = labels.astype(jnp.int32)
    # shift on the label side: row (b, s) is scored against labels[b, s+1];
    # the final position of every sequence is dropped via ignore_index.
    tgt = jnp.concatenate(
        [labels[:, 1:], jnp.full((b, 1), IGNORE_INDEX, jnp.int32)], axis=1
    ).reshape(-1)
    cur = labels.reshape(-1)                  # routes lm vs special logits

    # Target-logit pick on the wrapper side (O(n) gather of one element per row,
    # routed by the special-token mask) — removes the full-width compare/select
    # from the bandwidth/VALU-bound kernel.
    # TODO(synk): labels >= vocab_size (other than -100) silently contribute a
    # clipped pick here, whereas PyTorch CrossEntropyLoss would raise.
    idx = jnp.clip(tgt, 0, vocab_size - 1)[:, None]
    picked_lm = jnp.take_along_axis(lm2d, idx, axis=-1)
    picked_sp = jnp.take_along_axis(sp2d, idx, axis=-1)
    picked = jnp.where((cur > SPECIAL_TOKEN_THRESHOLD)[:, None],
                       picked_sp, picked_lm).astype(jnp.float32)       # (n, 1)

    itemsize = jnp.dtype(lm2d.dtype).itemsize
    tm, tv, need_mask, vmem_limit = _choose_tiles(n, vocab_size, itemsize)
    n_tiles = pl.cdiv(n, tm)
    n_kv = pl.cdiv(vocab_size, tv)
    n_pad = n_tiles * tm
    pad = n_pad - n

    # only the tiny label-side vectors are padded; the ragged last logits tile is
    # fetched as a partial block and its garbage rows masked via ignore_index.
    tgt_p = jnp.pad(tgt, (0, pad), constant_values=IGNORE_INDEX).reshape(n_pad, 1)
    cur_p = jnp.pad(cur, (0, pad), constant_values=0).reshape(n_pad, 1)
    picked_p = jnp.pad(picked, ((0, pad), (0, 0)))

    # per-token-tile "contains a special token" flag (scalar-prefetched): tiles
    # with flag == 0 never (re)DMA the special-logits stream and skip the select.
    flags = (cur_p.reshape(n_tiles, tm) > SPECIAL_TOKEN_THRESHOLD).any(axis=1)
    flags = flags.astype(jnp.int32)

    kernel = functools.partial(_ce_kernel, vocab_size=vocab_size, tv=tv,
                               need_mask=need_mask)

    cost = pl.CostEstimate(
        flops=5 * n * vocab_size,
        transcendentals=n * vocab_size,
        bytes_accessed=n * vocab_size * itemsize + 16 * n)

    partials = pl.pallas_call(
        kernel,
        out_shape=jax.ShapeDtypeStruct((n_tiles, 2, 128), jnp.float32),
        grid_spec=pltpu.PrefetchScalarGridSpec(
            num_scalar_prefetch=1,
            grid=(n_tiles, n_kv),
            in_specs=[
                pl.BlockSpec((tm, 1), lambda i, k, flg: (i, 0)),    # shifted tgt
                pl.BlockSpec((tm, 1), lambda i, k, flg: (i, 0)),    # current label
                pl.BlockSpec((tm, 1), lambda i, k, flg: (i, 0)),    # picked logit
                pl.BlockSpec((tm, tv), lambda i, k, flg: (i, k)),   # lm chunk
                pl.BlockSpec((tm, tv),                              # special chunk
                             lambda i, k, flg: (i * flg[i], k * flg[i])),
            ],
            out_specs=pl.BlockSpec((1, 2, 128), lambda i, k, flg: (i, 0, 0)),
            scratch_shapes=[pltpu.VMEM((tm, 1), jnp.float32)] * 2,
        ),
        compiler_params=pltpu.CompilerParams(
            dimension_semantics=("parallel", "arbitrary"),
            vmem_limit_bytes=vmem_limit,
        ),
        cost_estimate=cost,
    )(flags, tgt_p, cur_p, picked_p, lm2d, sp2d)

    loss_sum = jnp.sum(partials[:, 0, 0])
    tok_cnt = jnp.sum(partials[:, 1, 0])
    # NaN when every token is ignored (0/0), matching PyTorch reduction='mean'.
    loss = loss_sum / tok_cnt
    return loss, {}


def _reference(output, labels, vocab_size):
    """Pure-JAX reference mirroring the PyTorch module (f32 math)."""
    lm, sp = output
    lm = lm.astype(jnp.float32)
    sp = sp.astype(jnp.float32)
    x = jnp.where((labels > SPECIAL_TOKEN_THRESHOLD)[..., None], sp, lm)
    sl = x[:, :-1, :].reshape(-1, vocab_size)
    sy = labels[:, 1:].reshape(-1)
    logp = jax.nn.log_softmax(sl, axis=-1)
    valid = sy != IGNORE_INDEX
    idx = jnp.clip(sy, 0, vocab_size - 1)
    nll = -jnp.take_along_axis(logp, idx[:, None], axis=-1)[:, 0]
    nll = jnp.where(valid, nll, 0.0)
    return jnp.sum(nll) / jnp.sum(valid.astype(jnp.float32))


if __name__ == "__main__":
    # vocab must straddle the hard-coded 32000 special-token threshold; 33024 also
    # exercises the divisor-based vocab chunking (tv=5504, 6 chunks, no tail mask).
    B, S, V = 2, 9, 33024
    key = jax.random.PRNGKey(0)
    k_lm, k_sp, k_lab = jax.random.split(key, 3)

    lm_logits = jax.random.normal(k_lm, (B, S, V), dtype=jnp.bfloat16)
    special_logits = jax.random.normal(k_sp, (B, S, V), dtype=jnp.bfloat16)
    labels = jax.random.randint(k_lab, (B, S), 0, 31000, dtype=jnp.int32)
    # exercise special-logits routing, ignore_index, and the per-tile skip path
    labels = labels.at[0, 2].set(32500)          # routed through special_logits
    labels = labels.at[1, 5].set(V - 1)          # routed through special_logits
    labels = labels.at[0, 4].set(IGNORE_INDEX)   # ignored target
    labels = labels.at[1, 0].set(7)
    # (with tm capped for 2 token tiles, tile 1 contains no special token, so the
    #  flag==0 "lm only, no special DMA" branch is exercised too)

    loss, aux = bio0_autoregressive_criterion(
        (lm_logits, special_logits), labels, vocab_size=V)
    loss = jax.block_until_ready(loss)

    ref = _reference((lm_logits, special_logits), labels, V)
    assert aux == {}
    assert bool(jnp.isfinite(loss)), loss
    assert jnp.allclose(loss, ref, rtol=1e-4, atol=1e-4), (loss, ref)

    print("KERNEL_OK")
</pallas_src>

<mosaic_0001>
module attributes {stable_mosaic.version = 11 : i64} {
  func.func @_ce_kernel(%arg0: i32, %arg1: i32, %arg2: memref<2xi32, #tpu.memory_space<smem>>, %arg3: memref<16x1xi32, #tpu.memory_space<vmem>>, %arg4: memref<16x1xi32, #tpu.memory_space<vmem>>, %arg5: memref<16x1xf32, #tpu.memory_space<vmem>>, %arg6: memref<16x5504xbf16, #tpu.memory_space<vmem>>, %arg7: memref<16x5504xbf16, #tpu.memory_space<vmem>>, %arg8: memref<1x2x128xf32, #tpu.memory_space<vmem>>, %arg9: memref<16x1xf32, #tpu.memory_space<vmem>>, %arg10: memref<16x1xf32, #tpu.memory_space<vmem>>) attributes {dimension_semantics = [#tpu.dimension_semantics<parallel>, #tpu.dimension_semantics<arbitrary>], iteration_bounds = array<i64: 2, 6>, scalar_prefetch = 1 : i64, scratch_operands = 2 : i64, tpu.core_type = #tpu.core_type<tc>, window_params = [{transform_indices = @transform_0, window_bounds = array<i64: 16, 1>}, {transform_indices = @transform_1, window_bounds = array<i64: 16, 1>}, {transform_indices = @transform_2, window_bounds = array<i64: 16, 1>}, {transform_indices = @transform_3, window_bounds = array<i64: 16, 5504>}, {transform_indices = @transform_4, window_bounds = array<i64: 16, 5504>}, {transform_indices = @transform_5, window_bounds = array<i64: 1, 2, 128>}]} {
    %c0_i32 = arith.constant 0 : i32
    %0 = arith.cmpi eq, %arg1, %c0_i32 : i32
    %1 = arith.extui %0 : i1 to i32
    %c0_i32_0 = arith.constant 0 : i32
    %2 = arith.cmpi ne, %1, %c0_i32_0 : i32
    scf.if %2 {
      %cst = arith.constant 0xFF800000 : f32
      %14 = vector.broadcast %cst : f32 to vector<16x1xf32>
      %c0 = arith.constant 0 : index
      %c0_5 = arith.constant 0 : index
      %15 = vector.load %arg9[%c0, %c0_5] : memref<16x1xf32, #tpu.memory_space<vmem>>, vector<16x1xf32>
      tpu.vector_store %arg9[%c0, %c0_5], %14 {strides = array<i32>} : memref<16x1xf32, #tpu.memory_space<vmem>>, vector<16x1xf32>,
      %cst_6 = arith.constant 0.000000e+00 : f32
      %16 = vector.broadcast %cst_6 : f32 to vector<16x1xf32>
      %c0_7 = arith.constant 0 : index
      %c0_8 = arith.constant 0 : index
      %17 = vector.load %arg10[%c0_7, %c0_8] : memref<16x1xf32, #tpu.memory_space<vmem>>, vector<16x1xf32>
      tpu.vector_store %arg10[%c0_7, %c0_8], %16 {strides = array<i32>} : memref<16x1xf32, #tpu.memory_space<vmem>>, vector<16x1xf32>,
    } else {
    }
    %3 = arith.index_cast %arg0 : i32 to index
    %4 = memref.load %arg2[%3] : memref<2xi32, #tpu.memory_space<smem>>
    %c0_i32_1 = arith.constant 0 : i32
    %5 = arith.cmpi ne, %4, %c0_i32_1 : i32
    %6 = arith.extui %5 : i1 to i32
    %c0_i32_2 = arith.constant 0 : i32
    %7 = arith.cmpi ne, %6, %c0_i32_2 : i32
    scf.if %7 {
      %c0 = arith.constant 0 : index
      %c0_5 = arith.constant 0 : index
      %14 = vector.load %arg4[%c0, %c0_5] : memref<16x1xi32, #tpu.memory_space<vmem>>, vector<16x1xi32>
      %c32000_i32 = arith.constant 32000 : i32
      %15 = vector.broadcast %c32000_i32 : i32 to vector<16x1xi32>
      %16 = arith.cmpi sgt, %14, %15 : vector<16x1xi32>
      %c0_6 = arith.constant 0 : index
      %c0_7 = arith.constant 0 : index
      %17 = vector.load %arg7[%c0_6, %c0_7] : memref<16x5504xbf16, #tpu.memory_space<vmem>>, vector<16x5504xbf16>
      %c0_8 = arith.constant 0 : index
      %c0_9 = arith.constant 0 : index
      %18 = vector.load %arg6[%c0_8, %c0_9] : memref<16x5504xbf16, #tpu.memory_space<vmem>>, vector<16x5504xbf16>
      %19 = vector.shape_cast %16 : vector<16x1xi1> to vector<16x1xi1>
      %20 = vector.broadcast %19 : vector<16x1xi1> to vector<16x5504xi1>
      %21 = arith.select %20, %17, %18 : vector<16x5504xi1>, vector<16x5504xbf16>
      %22 = arith.extf %21 : vector<16x5504xbf16> to vector<16x5504xf32>
      %c0_10 = arith.constant 0 : index
      %c0_11 = arith.constant 0 : index
      %23 = vector.load %arg9[%c0_10, %c0_11] : memref<16x1xf32, #tpu.memory_space<vmem>>, vector<16x1xf32>
      %cst = arith.constant dense<0xFF800000> : vector<16xf32>
      %24 = vector.multi_reduction <maximumf>, %22, %cst [1] : vector<16x5504xf32> to vector<16xf32>
      %25 = vector.shape_cast %24 : vector<16xf32> to vector<16x1xf32>
      %26 = arith.maximumf %23, %25 : vector<16x1xf32>
      %c0_12 = arith.constant 0 : index
      %c0_13 = arith.constant 0 : index
      %27 = vector.load %arg10[%c0_12, %c0_13] : memref<16x1xf32, #tpu.memory_space<vmem>>, vector<16x1xf32>
      %28 = arith.subf %23, %26 : vector<16x1xf32>
      %29 = math.exp %28 : vector<16x1xf32>
      %30 = arith.mulf %27, %29 : vector<16x1xf32>
      %31 = vector.broadcast %26 : vector<16x1xf32> to vector<16x5504xf32>
      %32 = arith.subf %22, %31 : vector<16x5504xf32>
      %33 = math.exp %32 : vector<16x5504xf32>
      %cst_14 = arith.constant dense<0.000000e+00> : vector<16xf32>
      %34 = vector.multi_reduction <add>, %33, %cst_14 [1] : vector<16x5504xf32> to vector<16xf32>
      %35 = vector.shape_cast %34 : vector<16xf32> to vector<16x1xf32>
      %36 = arith.addf %30, %35 : vector<16x1xf32>
      %c0_15 = arith.constant 0 : index
      %c0_16 = arith.constant 0 : index
      %37 = vector.load %arg10[%c0_15, %c0_16] : memref<16x1xf32, #tpu.memory_space<vmem>>, vector<16x1xf32>
      tpu.vector_store %arg10[%c0_15, %c0_16], %36 {strides = array<i32>} : memref<16x1xf32, #tpu.memory_space<vmem>>, vector<16x1xf32>,
      %c0_17 = arith.constant 0 : index
      %c0_18 = arith.constant 0 : index
      %38 = vector.load %arg9[%c0_17, %c0_18] : memref<16x1xf32, #tpu.memory_space<vmem>>, vector<16x1xf32>
      tpu.vector_store %arg9[%c0_17, %c0_18], %26 {strides = array<i32>} : memref<16x1xf32, #tpu.memory_space<vmem>>, vector<16x1xf32>,
    } else {
    }
    %true = arith.constant true
    %8 = arith.xori %5, %true : i1
    %9 = arith.extui %8 : i1 to i32
    %c0_i32_3 = arith.constant 0 : i32
    %10 = arith.cmpi ne, %9, %c0_i32_3 : i32
    scf.if %10 {
      %c0 = arith.constant 0 : index
      %c0_5 = arith.constant 0 : index
      %14 = vector.load %arg6[%c0, %c0_5] : memref<16x5504xbf16, #tpu.memory_space<vmem>>, vector<16x5504xbf16>
      %15 = arith.extf %14 : vector<16x5504xbf16> to vector<16x5504xf32>
      %c0_6 = arith.constant 0 : index
      %c0_7 = arith.constant 0 : index
      %16 = vector.load %arg9[%c0_6, %c0_7] : memref<16x1xf32, #tpu.memory_space<vmem>>, vector<16x1xf32>
      %cst = arith.constant dense<0xFF800000> : vector<16xf32>
      %17 = vector.multi_reduction <maximumf>, %15, %cst [1] : vector<16x5504xf32> to vector<16xf32>
      %18 = vector.shape_cast %17 : vector<16xf32> to vector<16x1xf32>
      %19 = arith.maximumf %16, %18 : vector<16x1xf32>
      %c0_8 = arith.constant 0 : index
      %c0_9 = arith.constant 0 : index
      %20 = vector.load %arg10[%c0_8, %c0_9] : memref<16x1xf32, #tpu.memory_space<vmem>>, vector<16x1xf32>
      %21 = arith.subf %16, %19 : vector<16x1xf32>
      %22 = math.exp %21 : vector<16x1xf32>
      %23 = arith.mulf %20, %22 : vector<16x1xf32>
      %24 = vector.broadcast %19 : vector<16x1xf32> to vector<16x5504xf32>
      %25 = arith.subf %15, %24 : vector<16x5504xf32>
      %26 = math.exp %25 : vector<16x5504xf32>
      %cst_10 = arith.constant dense<0.000000e+00> : vector<16xf32>
      %27 = vector.multi_reduction <add>, %26, %cst_10 [1] : vector<16x5504xf32> to vector<16xf32>
      %28 = vector.shape_cast %27 : vector<16xf32> to vector<16x1xf32>
      %29 = arith.addf %23, %28 : vector<16x1xf32>
      %c0_11 = arith.constant 0 : index
      %c0_12 = arith.constant 0 : index
      %30 = vector.load %arg10[%c0_11, %c0_12] : memref<16x1xf32, #tpu.memory_space<vmem>>, vector<16x1xf32>
      tpu.vector_store %arg10[%c0_11, %c0_12], %29 {strides = array<i32>} : memref<16x1xf32, #tpu.memory_space<vmem>>, vector<16x1xf32>,
      %c0_13 = arith.constant 0 : index
      %c0_14 = arith.constant 0 : index
      %31 = vector.load %arg9[%c0_13, %c0_14] : memref<16x1xf32, #tpu.memory_space<vmem>>, vector<16x1xf32>
      tpu.vector_store %arg9[%c0_13, %c0_14], %19 {strides = array<i32>} : memref<16x1xf32, #tpu.memory_space<vmem>>, vector<16x1xf32>,
    } else {
    }
    %c5_i32 = arith.constant 5 : i32
    %11 = arith.cmpi eq, %arg1, %c5_i32 : i32
    %12 = arith.extui %11 : i1 to i32
    %c0_i32_4 = arith.constant 0 : i32
    %13 = arith.cmpi ne, %12, %c0_i32_4 : i32
    scf.if %13 {
      %c0 = arith.constant 0 : index
      %c0_5 = arith.constant 0 : index
      %14 = vector.load %arg3[%c0, %c0_5] : memref<16x1xi32, #tpu.memory_space<vmem>>, vector<16x1xi32>
      %c-100_i32 = arith.constant -100 : i32
      %15 = vector.broadcast %c-100_i32 : i32 to vector<16x1xi32>
      %16 = arith.cmpi ne, %14, %15 : vector<16x1xi32>
      %c0_6 = arith.constant 0 : index
      %c0_7 = arith.constant 0 : index
      %17 = vector.load %arg9[%c0_6, %c0_7] : memref<16x1xf32, #tpu.memory_space<vmem>>, vector<16x1xf32>
      %c0_8 = arith.constant 0 : index
      %c0_9 = arith.constant 0 : index
      %18 = vector.load %arg10[%c0_8, %c0_9] : memref<16x1xf32, #tpu.memory_space<vmem>>, vector<16x1xf32>
      %19 = math.log %18 : vector<16x1xf32>
      %20 = arith.addf %17, %19 : vector<16x1xf32>
      %c0_10 = arith.constant 0 : index
      %c0_11 = arith.constant 0 : index
      %21 = vector.load %arg5[%c0_10, %c0_11] : memref<16x1xf32, #tpu.memory_space<vmem>>, vector<16x1xf32>
      %22 = arith.subf %20, %21 : vector<16x1xf32>
      %cst = arith.constant 0.000000e+00 : f32
      %23 = vector.broadcast %cst : f32 to vector<16x1xf32>
      %24 = arith.select %16, %22, %23 : vector<16x1xi1>, vector<16x1xf32>
      %25 = vector.shape_cast %24 : vector<16x1xf32> to vector<1x16x1xf32>
      %cst_12 = arith.constant dense<0.000000e+00> : vector<1xf32>
      %26 = vector.multi_reduction <add>, %25, %cst_12 [1, 2] : vector<1x16x1xf32> to vector<1xf32>
      %27 = vector.shape_cast %26 : vector<1xf32> to vector<1x1x1xf32>
      %28 = vector.extract %27[0, 0, 0] : f32 from vector<1x1x1xf32>
      %29 = arith.extui %16 : vector<16x1xi1> to vector<16x1xi32>
      %30 = arith.sitofp %29 : vector<16x1xi32> to vector<16x1xf32>
      %31 = vector.shape_cast %30 : vector<16x1xf32> to vector<1x16x1xf32>
      %cst_13 = arith.constant dense<0.000000e+00> : vector<1xf32>
      %32 = vector.multi_reduction <add>, %31, %cst_13 [1, 2] : vector<1x16x1xf32> to vector<1xf32>
      %33 = vector.shape_cast %32 : vector<1xf32> to vector<1x1x1xf32>
      %34 = vector.extract %33[0, 0, 0] : f32 from vector<1x1x1xf32>
      %35 = tpu.iota {dimensions = array<i32: 1>} : vector<1x2x128xi32>
      %c0_i32_14 = arith.constant 0 : i32
      %36 = vector.broadcast %c0_i32_14 : i32 to vector<1x2x128xi32>
      %37 = arith.cmpi eq, %35, %36 : vector<1x2x128xi32>
      %38 = vector.broadcast %28 : f32 to vector<1x2x128xf32>
      %39 = vector.broadcast %34 : f32 to vector<1x2x128xf32>
      %40 = arith.select %37, %38, %39 : vector<1x2x128xi1>, vector<1x2x128xf32>
      %c0_15 = arith.constant 0 : index
      %c0_16 = arith.constant 0 : index
      %c0_17 = arith.constant 0 : index
      %41 = vector.load %arg8[%c0_15, %c0_16, %c0_17] : memref<1x2x128xf32, #tpu.memory_space<vmem>>, vector<1x2x128xf32>
      tpu.vector_store %arg8[%c0_15, %c0_16, %c0_17], %40 {strides = array<i32>} : memref<1x2x128xf32, #tpu.memory_space<vmem>>, vector<1x2x128xf32>,
    } else {
    }
    return
  }
  func.func @transform_0(%arg0: i32, %arg1: i32, %arg2: memref<2xi32, #tpu.memory_space<smem>>) -> (i32, i32) {
    %c0_i32 = arith.constant 0 : i32
    %c0_i32_0 = arith.constant 0 : i32
    return %arg0, %c0_i32 : i32, i32
  }
  func.func @transform_1(%arg0: i32, %arg1: i32, %arg2: memref<2xi32, #tpu.memory_space<smem>>) -> (i32, i32) {
    %c0_i32 = arith.constant 0 : i32
    %c0_i32_0 = arith.constant 0 : i32
    return %arg0, %c0_i32 : i32, i32
  }
  func.func @transform_2(%arg0: i32, %arg1: i32, %arg2: memref<2xi32, #tpu.memory_space<smem>>) -> (i32, i32) {
    %c0_i32 = arith.constant 0 : i32
    %c0_i32_0 = arith.constant 0 : i32
    return %arg0, %c0_i32 : i32, i32
  }
  func.func @transform_3(%arg0: i32, %arg1: i32, %arg2: memref<2xi32, #tpu.memory_space<smem>>) -> (i32, i32) {
    %c0_i32 = arith.constant 0 : i32
    return %arg0, %arg1 : i32, i32
  }
  func.func @transform_4(%arg0: i32, %arg1: i32, %arg2: memref<2xi32, #tpu.memory_space<smem>>) -> (i32, i32) {
    %0 = arith.index_cast %arg0 : i32 to index
    %1 = memref.load %arg2[%0] : memref<2xi32, #tpu.memory_space<smem>>
    %2 = arith.muli %arg0, %1 : i32
    %3 = arith.index_cast %arg0 : i32 to index
    %4 = memref.load %arg2[%3] : memref<2xi32, #tpu.memory_space<smem>>
    %5 = arith.muli %arg1, %4 : i32
    %c0_i32 = arith.constant 0 : i32
    return %2, %5 : i32, i32
  }
  func.func @transform_5(%arg0: i32, %arg1: i32, %arg2: memref<2xi32, #tpu.memory_space<smem>>) -> (i32, i32, i32) {
    %c0_i32 = arith.constant 0 : i32
    %c0_i32_0 = arith.constant 0 : i32
    %c0_i32_1 = arith.constant 0 : i32
    return %arg0, %c0_i32, %c0_i32_0 : i32, i32, i32
  }
}

</mosaic_0001>

<llo_original>
// kernel: bio0_autoregressive_criterion.1
$region0: #{bio0_autoregressive_criterion.1}
  #allocation0 [shape = 'u32[]', space=smem, size = 0x4, offset = 0x4, fixed_abs, tag = 'smem constant byte address 0x4 - core index']
  #allocation1 [shape = 'u32[144,128]{1,0:T(1,128)}', space=vmem, size = 0x12000, scoped, tag = 'internal scratch']
  #allocation2 [shape = 'f32[16,1]{1,0:T(8,128)}', space=vmem, size = 0x2000, scoped, tag = 'scratch operand']
  #allocation3 [shape = 'f32[16,1]{1,0:T(8,128)}', space=vmem, size = 0x2000, scoped, tag = 'scratch operand']
  #allocation4 [shape = 's32[1]{0}', space=sflag, size = 0x4, scoped, tag = 'scoped memory for bio0_autoregressive_criterion.1']
  #allocation5 [shape = 'u8[512]{0}', space=smem, size = 0x200, scoped, tag = 'prefetched SMEM operand 0']
  %s0 = inlined_call_operand.vmem [shape: s32[2], index: 0, kind: input, shape index: {}]
  %s1 = inlined_call_operand.vmem [shape: s32[32,1], index: 1, kind: input, shape index: {}]
  %s2 = inlined_call_operand.vmem [shape: s32[32,1], index: 2, kind: input, shape index: {}]
  %s3 = inlined_call_operand.vmem [shape: f32[32,1], index: 3, kind: input, shape index: {}]
  %s4 = inlined_call_operand.vmem [shape: bf16[18,33024], index: 4, kind: input, shape index: {}]
  %s5 = inlined_call_operand.vmem [shape: bf16[18,33024], index: 5, kind: input, shape index: {}]
  %s6 = inlined_call_operand.vmem [shape: f32[2,2,128], index: 6, kind: output, shape index: {}]
  %s7 = sld [smem:[#allocation0]]
  $region149: #{bio0_autoregressive_criterion.1} parent=0
    _
  %s9 = ssub.s32 1, %s7
  %s10 = scalar_select 0, %s9, %s7
  %s11 = sshll.u32 %s0, 4
  %s12 = int_to_ptr.vmem [resolvable:$true] %s11
  %14 = dma.vmem_to_smem %s12, 16, [#allocation5], [#allocation4]
  %15 = dma.done [#allocation4], 16
  %16 = sfence
  $region1: #{bio0_autoregressive_criterion.1} parent=0
    #allocation6 [shape = 'u8[352256]{0}', space=vmem, size = 0x56000, scoped, tag = 'input window, operand 4']
    #allocation7 [shape = 'u8[352256]{0}', space=vmem, size = 0x56000, scoped, tag = 'input window, operand 5']
    loop: start=0, step=1, limit=14
    $region2: #{bio0_autoregressive_criterion.1} parent=1 // loop_pre_header
      _
    $region3: #{bio0_autoregressive_criterion.1} parent=1 // loop_header
      %s18 = sphi 0, %s22
      %p19 = scmp.ge.s32.totalorder %s18, 14
      %s25 = sphi 0, %s37
      %s26 = sphi 0, %s33
      %s27 = sphi 0, %s25
      %s28 = sphi 0, %s26
      %s29 = sphi 0, %s27
      %s30 = sphi 0, %s28
      %s40 = sphi 0, %s42
      %s43 = sphi 0, %s40
      %s44 = sphi 0, %s43
      %s60 = sphi 0, %s44
      %s66 = sphi 0, %s68
      %s69 = sphi 0, %s66
      %s70 = sphi 0, %s69
      %s86 = sphi 0, %s70
      %s92 = sphi 0, %s94
      %s95 = sphi 0, %s92
      %s96 = sphi 0, %s95
      %s112 = sphi 0, %s96
      %s120 = sphi 0, %s122
      %s123 = sphi 0, %s120
      %s124 = sphi 0, %s123
      %s140 = sphi 0, %s124
      %s154 = sphi 0, %s156
      %s157 = sphi 0, %s154
      %s158 = sphi 0, %s157
      %s174 = sphi 0, %s158
      %s180 = sphi 0, %s182
      %s183 = sphi 0, %s180
      %s184 = sphi 0, %s183
      %s200 = sphi 0, %s184
    $region4: #{bio0_autoregressive_criterion.1} parent=1 // loop_header_branch
      %21 = sbr.rel (%p19) target = $region8
    $region5: #{bio0_autoregressive_criterion.1} parent=1 // loop_body
      %s23 = ssub.s32 %s18, 1
      %s24 = ssub.s32 %s18, 2
      %s31 = sadd.s32 1, %s26
      %p32 = scmp.ge.s32.totalorder %s31, 6
      %s33 = scalar_select %p32, 0, %s31
      %s34 = sadd.s32 1, %s25
      %s35 = scalar_select %p32, %s34, %s25
      %p36 = scmp.ge.s32.totalorder %s35, 2
      %s37 = scalar_select %p36, 0, %s35
      %s38 = ssub.s32 %s25, %s37
      %p39 = scmp.eq.s32.totalorder %s38, 0
      %s41 = sadd.s32 %s40, 1
      %s42 = scalar_select %p39, %s40, %s41
      %p45 = pneg %p39
      %p46 = scmp.eq.s32.totalorder %s18, 11
      %p47 = por %p45, %p46
      %p48 = scmp.ne.s32.totalorder %s40, %s43
      %p49 = scmp.eq.s32.totalorder %s18, 0
      %p50 = por %p48, %p49
      %p51 = scmp.ne.s32.totalorder %s40, %s43
      %p52 = scmp.eq.s32.totalorder %s23, 11
      %p53 = por %p51, %p52
      %p54 = scmp.ne.s32.totalorder %s43, %s44
      %p55 = scmp.eq.s32.totalorder %s23, 0
      %p56 = por %p54, %p55
      %p57 = scmp.ne.s32.totalorder %s43, %s44
      %p58 = scmp.eq.s32.totalorder %s24, 11
      %p59 = por %p57, %p58
      %p61 = scmp.ne.s32.totalorder %s44, %s60
      %p62 = scmp.eq.s32.totalorder %s24, 0
      %p63 = por %p61, %p62
      %s64 = ssub.s32 %s25, %s37
      %p65 = scmp.eq.s32.totalorder %s64, 0
      %s67 = sadd.s32 %s66, 1
      %s68 = scalar_select %p65, %s66, %s67
      %p71 = pneg %p65
      %p72 = scmp.eq.s32.totalorder %s18, 11
      %p73 = por %p71, %p72
      %p74 = scmp.ne.s32.totalorder %s66, %s69
      %p75 = scmp.eq.s32.totalorder %s18, 0
      %p76 = por %p74, %p75
      %p77 = scmp.ne.s32.totalorder %s66, %s69
      %p78 = scmp.eq.s32.totalorder %s23, 11
      %p79 = por %p77, %p78
      %p80 = scmp.ne.s32.totalorder %s69, %s70
      %p81 = scmp.eq.s32.totalorder %s23, 0
      %p82 = por %p80, %p81
      %p83 = scmp.ne.s32.totalorder %s69, %s70
      %p84 = scmp.eq.s32.totalorder %s24, 11
      %p85 = por %p83, %p84
      %p87 = scmp.ne.s32.totalorder %s70, %s86
      %p88 = scmp.eq.s32.totalorder %s24, 0
      %p89 = por %p87, %p88
      %s90 = ssub.s32 %s25, %s37
      %p91 = scmp.eq.s32.totalorder %s90, 0
      %s93 = sadd.s32 %s92, 1
      %s94 = scalar_select %p91, %s92, %s93
      %p97 = pneg %p91
      %p98 = scmp.eq.s32.totalorder %s18, 11
      %p99 = por %p97, %p98
      %p100 = scmp.ne.s32.totalorder %s92, %s95
      %p101 = scmp.eq.s32.totalorder %s18, 0
      %p102 = por %p100, %p101
      %p103 = scmp.ne.s32.totalorder %s92, %s95
      %p104 = scmp.eq.s32.totalorder %s23, 11
      %p105 = por %p103, %p104
      %p106 = scmp.ne.s32.totalorder %s95, %s96
      %p107 = scmp.eq.s32.totalorder %s23, 0
      %p108 = por %p106, %p107
      %p109 = scmp.ne.s32.totalorder %s95, %s96
      %p110 = scmp.eq.s32.totalorder %s24, 11
      %p111 = por %p109, %p110
      %p113 = scmp.ne.s32.totalorder %s96, %s112
      %p114 = scmp.eq.s32.totalorder %s24, 0
      %p115 = por %p113, %p114
      %s116 = ssub.s32 %s25, %s37
      %s117 = ssub.s32 %s26, %s33
      %s118 = sor.u32 %s116, %s117
      %p119 = scmp.eq.s32.totalorder %s118, 0
      %s121 = sadd.s32 %s120, 1
      %s122 = scalar_select %p119, %s120, %s121
      %p125 = pneg %p119
      %p126 = scmp.eq.s32.totalorder %s18, 11
      %p127 = por %p125, %p126
      %p128 = scmp.ne.s32.totalorder %s120, %s123
      %p129 = scmp.eq.s32.totalorder %s18, 0
      %p130 = por %p128, %p129
      %p131 = scmp.ne.s32.totalorder %s120, %s123
      %p132 = scmp.eq.s32.totalorder %s23, 11
      %p133 = por %p131, %p132
      %p134 = scmp.ne.s32.totalorder %s123, %s124
      %p135 = scmp.eq.s32.totalorder %s23, 0
      %p136 = por %p134, %p135
      %p137 = scmp.ne.s32.totalorder %s123, %s124
      %p138 = scmp.eq.s32.totalorder %s24, 11
      %p139 = por %p137, %p138
      %p141 = scmp.ne.s32.totalorder %s124, %s140
      %p142 = scmp.eq.s32.totalorder %s24, 0
      %p143 = por %p141, %p142
      %s144 = sld [smem:[#allocation5 + %s25]]
      %s145 = smul.u32 %s25, %s144
      %s146 = smul.u32 %s26, %s144
      %s147 = sld [smem:[#allocation5 + %s37]]
      %s148 = smul.u32 %s37, %s147
      %s149 = smul.u32 %s33, %s147
      %s150 = ssub.s32 %s145, %s148
      %s151 = ssub.s32 %s146, %s149
      %s152 = sor.u32 %s150, %s151
      %p153 = scmp.eq.s32.totalorder %s152, 0
      %s155 = sadd.s32 %s154, 1
      %s156 = scalar_select %p153, %s154, %s155
      %p159 = pneg %p153
      %p160 = scmp.eq.s32.totalorder %s18, 11
      %p161 = por %p159, %p160
      %p162 = scmp.ne.s32.totalorder %s154, %s157
      %p163 = scmp.eq.s32.totalorder %s18, 0
      %p164 = por %p162, %p163
      %p165 = scmp.ne.s32.totalorder %s154, %s157
      %p166 = scmp.eq.s32.totalorder %s23, 11
      %p167 = por %p165, %p166
      %p168 = scmp.ne.s32.totalorder %s157, %s158
      %p169 = scmp.eq.s32.totalorder %s23, 0
      %p170 = por %p168, %p169
      %p171 = scmp.ne.s32.totalorder %s157, %s158
      %p172 = scmp.eq.s32.totalorder %s24, 11
      %p173 = por %p171, %p172
      %p175 = scmp.ne.s32.totalorder %s158, %s174
      %p176 = scmp.eq.s32.totalorder %s24, 0
      %p177 = por %p175, %p176
      %s178 = ssub.s32 %s25, %s37
      %p179 = scmp.eq.s32.totalorder %s178, 0
      %s181 = sadd.s32 %s180, 1
      %s182 = scalar_select %p179, %s180, %s181
      %p185 = pneg %p179
      %p186 = scmp.eq.s32.totalorder %s18, 11
      %p187 = por %p185, %p186
      %p188 = scmp.ne.s32.totalorder %s180, %s183
      %p189 = scmp.eq.s32.totalorder %s18, 0
      %p190 = por %p188, %p189
      %p191 = scmp.ne.s32.totalorder %s180, %s183
      %p192 = scmp.eq.s32.totalorder %s23, 11
      %p193 = por %p191, %p192
      %p194 = scmp.ne.s32.totalorder %s183, %s184
      %p195 = scmp.eq.s32.totalorder %s23, 0
      %p196 = por %p194, %p195
      %p197 = scmp.ne.s32.totalorder %s183, %s184
      %p198 = scmp.eq.s32.totalorder %s24, 11
      %p199 = por %p197, %p198
      %p201 = scmp.ne.s32.totalorder %s184, %s200
      %p202 = scmp.eq.s32.totalorder %s24, 0
      %p203 = por %p201, %p202
      %p204 = scmp.le.s32.totalorder 1, %s18
      %p205 = scmp.lt.s32.totalorder %s18, 13
      %p206 = pnand %p204, %p205
      %p207 = pneg %p206
      // Predicated region
      $region9: #{bio0_autoregressive_criterion.1} parent=5 // pred_check
        _
      $region10: #{bio0_autoregressive_criterion.1} parent=5 // pred_check_branch
        %209 = sbr.rel (%p206) target = $region12
      $region11: #{bio0_autoregressive_criterion.1} parent=5 // pred_region
        %s210 = ssub.s32 %s18, 1
      $region12: #{bio0_autoregressive_criterion.1} parent=5 // pred_fallthru
        _
      %p211 = scmp.lt.s32.totalorder %s18, 12
      // Predicated region
      $region13: #{bio0_autoregressive_criterion.1} parent=5 // pred_check
        %p212 = pneg %p211
      $region14: #{bio0_autoregressive_criterion.1} parent=5 // pred_check_branch
        %214 = sbr.rel (%p212) target = $region16
      $region15: #{bio0_autoregressive_criterion.1} parent=5 // pred_region
        // Predicated region
        $region17: #{bio0_autoregressive_criterion.1} parent=15 // pred_check
          %p215 = pneg %p50
        $region18: #{bio0_autoregressive_criterion.1} parent=15 // pred_check_branch
          %217 = sbr.rel (%p215) target = $region20
        $region19: #{bio0_autoregressive_criterion.1} parent=15 // pred_region
          %s218 = smul.u32 2, %s25
          %p219 = scmp.lt.s32.totalorder %s218, 3
          %s220 = scalar_select %p219, %s218, 3
          %s221 = smul.addr %s220, 8
          %s222 = scalar_lea.vmem %s1, %s221
          %s223 = smul.u32 2, %s25
        $region20: #{bio0_autoregressive_criterion.1} parent=15 // pred_fallthru
          _
        // Predicated region
        $region21: #{bio0_autoregressive_criterion.1} parent=15 // pred_check
          %p224 = pneg %p76
        $region22: #{bio0_autoregressive_criterion.1} parent=15 // pred_check_branch
          %226 = sbr.rel (%p224) target = $region24
        $region23: #{bio0_autoregressive_criterion.1} parent=15 // pred_region
          %s227 = smul.u32 2, %s25
          %p228 = scmp.lt.s32.totalorder %s227, 3
          %s229 = scalar_select %p228, %s227, 3
          %s230 = smul.addr %s229, 8
          %s231 = scalar_lea.vmem %s2, %s230
          %s232 = smul.u32 2, %s25
        $region24: #{bio0_autoregressive_criterion.1} parent=15 // pred_fallthru
          _
        // Predicated region
        $region25: #{bio0_autoregressive_criterion.1} parent=15 // pred_check
          %p233 = pneg %p102
        $region26: #{bio0_autoregressive_criterion.1} parent=15 // pred_check_branch
          %235 = sbr.rel (%p233) target = $region28
        $region27: #{bio0_autoregressive_criterion.1} parent=15 // pred_region
          %s236 = smul.u32 2, %s25
          %p237 = scmp.lt.s32.totalorder %s236, 3
          %s238 = scalar_select %p237, %s236, 3
          %s239 = smul.addr %s238, 8
          %s240 = scalar_lea.vmem %s3, %s239
          %s241 = smul.u32 2, %s25
        $region28: #{bio0_autoregressive_criterion.1} parent=15 // pred_fallthru
          _
        // Predicated region
        $region29: #{bio0_autoregressive_criterion.1} parent=15 // pred_check
          %p242 = pneg %p130
        $region30: #{bio0_autoregressive_criterion.1} parent=15 // pred_check_branch
          %244 = sbr.rel (%p242) target = $region32
        $region31: #{bio0_autoregressive_criterion.1} parent=15 // pred_region
          %s245 = sand.u32 %s120, 1
          %s246 = sand.u32 %s120, 1
          %s247 = smul.addr %s246, 344
          %s248 = scalar_lea.vmem [#allocation6], %s247
          %s249 = smul.u32 2, %s25
          %s250 = smul.u32 43, %s26
          %s251 = ssub.s32 3, %s249
          %p252 = scmp.lt.s32.totalorder %s251, 2
          %s253 = scalar_select %p252, %s251, 2
          %s254 = smul.u32 64, %s253
          %s255 = smul.u32 %s254, 43
          %p256 = scmp.ne.s32.totalorder 0, %s255
          %s257 = smul.addr %s249, 258
          %s258 = sadd.s32 %s250, %s257
          %s259 = smul.addr %s258, 4
          %s260 = scalar_lea.vmem %s4, %s259
          // Predicated region
          $region33: #{bio0_autoregressive_criterion.1} parent=31 // pred_check
            %p261 = pneg %p256
          $region34: #{bio0_autoregressive_criterion.1} parent=31 // pred_check_branch
            %263 = sbr.rel (%p261) target = $region36
          $region35: #{bio0_autoregressive_criterion.1} parent=31 // pred_region
            // Predicated region
            $region37: #{bio0_autoregressive_criterion.1} parent=35 // pred_check
              _
            $region38: #{bio0_autoregressive_criterion.1} parent=35 // pred_check_branch
              %265 = sbr.rel (0) target = $region40
            $region39: #{bio0_autoregressive_criterion.1} parent=35 // pred_region
              %s266 = scalar_lea.vmem %s260, 168
              %s267 = scalar_lea.vmem %s248, 168 [#allocation6]
              %s268 = sshrl.u32 %s253, 1
              // While loop
              $region41: #{bio0_autoregressive_criterion.1} parent=39 // loop_pre_header
                _
              $region42: #{bio0_autoregressive_criterion.1} parent=39 // loop_header
                %s270 = sphi 0, %s272
                %p271 = scmp.ge.s32.totalorder %s270, %s268
                %s275 = sphi 0, %s364
                %s276 = sphi %s260, %s367
                %s277 = sphi %s248, %s368
              $region43: #{bio0_autoregressive_criterion.1} parent=39 // loop_header_branch
                %274 = sbr.rel (%p271) target = $region47
              $region44: #{bio0_autoregressive_criterion.1} parent=39 // loop_body
                %v278 = vld [vmem:[%s276] sm:$0xff]
                %279 = vst [vmem:[%s277] sm:$0xff] %v278
                %v280 = vld [vmem:[%s276 + $0x408] sm:$0xff]
                %281 = vst [vmem:[%s277 + $0xac] sm:$0xff] %v280
                %v282 = vld [vmem:[%s276 + $0x8] sm:$0xff]
                %283 = vst [vmem:[%s277 + $0x8] sm:$0xff] %v282
                %v284 = vld [vmem:[%s276 + $0x410] sm:$0xff]
                %285 = vst [vmem:[%s277 + $0xb4] sm:$0xff] %v284
                %v286 = vld [vmem:[%s276 + $0x10] sm:$0xff]
                %287 = vst [vmem:[%s277 + $0x10] sm:$0xff] %v286
                %v288 = vld [vmem:[%s276 + $0x418] sm:$0xff]
                %289 = vst [vmem:[%s277 + $0xbc] sm:$0xff] %v288
                %v290 = vld [vmem:[%s276 + $0x18] sm:$0xff]
                %291 = vst [vmem:[%s277 + $0x18] sm:$0xff] %v290
                %v292 = vld [vmem:[%s276 + $0x420] sm:$0xff]
                %293 = vst [vmem:[%s277 + $0xc4] sm:$0xff] %v292
                %v294 = vld [vmem:[%s276 + $0x20] sm:$0xff]
                %295 = vst [vmem:[%s277 + $0x20] sm:$0xff] %v294
                %v296 = vld [vmem:[%s276 + $0x428] sm:$0xff]
                %297 = vst [vmem:[%s277 + $0xcc] sm:$0xff] %v296
                %v298 = vld [vmem:[%s276 + $0x28] sm:$0xff]
                %299 = vst [vmem:[%s277 + $0x28] sm:$0xff] %v298
                %v300 = vld [vmem:[%s276 + $0x430] sm:$0xff]
                %301 = vst [vmem:[%s277 + $0xd4] sm:$0xff] %v300
                %v302 = vld [vmem:[%s276 + $0x30] sm:$0xff]
                %303 = vst [vmem:[%s277 + $0x30] sm:$0xff] %v302
                %v304 = vld [vmem:[%s276 + $0x438] sm:$0xff]
                %305 = vst [vmem:[%s277 + $0xdc] sm:$0xff] %v304
                %v306 = vld [vmem:[%s276 + $0x38] sm:$0xff]
                %307 = vst [vmem:[%s277 + $0x38] sm:$0xff] %v306
                %v308 = vld [vmem:[%s276 + $0x440] sm:$0xff]
                %309 = vst [vmem:[%s277 + $0xe4] sm:$0xff] %v308
                %v310 = vld [vmem:[%s276 + $0x40] sm:$0xff]
                %311 = vst [vmem:[%s277 + $0x40] sm:$0xff] %v310
                %v312 = vld [vmem:[%s276 + $0x448] sm:$0xff]
                %313 = vst [vmem:[%s277 + $0xec] sm:$0xff] %v312
                %v314 = vld [vmem:[%s276 + $0x48] sm:$0xff]
                %315 = vst [vmem:[%s277 + $0x48] sm:$0xff] %v314
                %v316 = vld [vmem:[%s276 + $0x450] sm:$0xff]
                %317 = vst [vmem:[%s277 + $0xf4] sm:$0xff] %v316
                %v318 = vld [vmem:[%s276 + $0x50] sm:$0xff]
                %319 = vst [vmem:[%s277 + $0x50] sm:$0xff] %v318
                %v320 = vld [vmem:[%s276 + $0x458] sm:$0xff]
                %321 = vst [vmem:[%s277 + $0xfc] sm:$0xff] %v320
                %v322 = vld [vmem:[%s276 + $0x58] sm:$0xff]
                %323 = vst [vmem:[%s277 + $0x58] sm:$0xff] %v322
                %v324 = vld [vmem:[%s276 + $0x460] sm:$0xff]
                %325 = vst [vmem:[%s277 + $0x104] sm:$0xff] %v324
                %v326 = vld [vmem:[%s276 + $0x60] sm:$0xff]
                %327 = vst [vmem:[%s277 + $0x60] sm:$0xff] %v326
                %v328 = vld [vmem:[%s276 + $0x468] sm:$0xff]
                %329 = vst [vmem:[%s277 + $0x10c] sm:$0xff] %v328
                %v330 = vld [vmem:[%s276 + $0x68] sm:$0xff]
                %331 = vst [vmem:[%s277 + $0x68] sm:$0xff] %v330
                %v332 = vld [vmem:[%s276 + $0x470] sm:$0xff]
                %333 = vst [vmem:[%s277 + $0x114] sm:$0xff] %v332
                %v334 = vld [vmem:[%s276 + $0x70] sm:$0xff]
                %335 = vst [vmem:[%s277 + $0x70] sm:$0xff] %v334
                %v336 = vld [vmem:[%s276 + $0x478] sm:$0xff]
                %337 = vst [vmem:[%s277 + $0x11c] sm:$0xff] %v336
                %v338 = vld [vmem:[%s276 + $0x78] sm:$0xff]
                %339 = vst [vmem:[%s277 + $0x78] sm:$0xff] %v338
                %v340 = vld [vmem:[%s276 + $0x480] sm:$0xff]
                %341 = vst [vmem:[%s277 + $0x124] sm:$0xff] %v340
                %v342 = vld [vmem:[%s276 + $0x80] sm:$0xff]
                %343 = vst [vmem:[%s277 + $0x80] sm:$0xff] %v342
                %v344 = vld [vmem:[%s276 + $0x488] sm:$0xff]
                %345 = vst [vmem:[%s277 + $0x12c] sm:$0xff] %v344
                %v346 = vld [vmem:[%s276 + $0x88] sm:$0xff]
                %347 = vst [vmem:[%s277 + $0x88] sm:$0xff] %v346
                %v348 = vld [vmem:[%s276 + $0x490] sm:$0xff]
                %349 = vst [vmem:[%s277 + $0x134] sm:$0xff] %v348
                %v350 = vld [vmem:[%s276 + $0x90] sm:$0xff]
                %351 = vst [vmem:[%s277 + $0x90] sm:$0xff] %v350
                %v352 = vld [vmem:[%s276 + $0x498] sm:$0xff]
                %353 = vst [vmem:[%s277 + $0x13c] sm:$0xff] %v352
                %v354 = vld [vmem:[%s276 + $0x98] sm:$0xff]
                %355 = vst [vmem:[%s277 + $0x98] sm:$0xff] %v354
                %v356 = vld [vmem:[%s276 + $0x4a0] sm:$0xff]
                %357 = vst [vmem:[%s277 + $0x144] sm:$0xff] %v356
                %v358 = vld [vmem:[%s276 + $0xa0] sm:$0xff]
                %359 = vst [vmem:[%s277 + $0xa0] sm:$0xff] %v358
                %v360 = vld [vmem:[%s276 + $0x4a8] sm:$0xff]
                %361 = vst [vmem:[%s277 + $0x14c] sm:$0xff] %v360
                %s362 = sadd.s32 1, %s275
                %p363 = scmp.ge.s32.totalorder %s362, %s268
                %s364 = scalar_select %p363, 0, %s362
                %s365 = smul.u32 %s364, 2064
                %s366 = smul.u32 %s364, 344
                %s367 = scalar_lea.vmem %s260, %s365
                %s368 = scalar_lea.vmem %s248, %s366 [#allocation6]
              $region45: #{bio0_autoregressive_criterion.1} parent=39 // loop_footer
                %s272 = sadd.s32 %s270, 1
              $region46: #{bio0_autoregressive_criterion.1} parent=39 // loop_footer_branch
                %269 = sbr.rel target = $region42
              $region47: #{bio0_autoregressive_criterion.1} parent=39 // loop_exit
                _
              %s369 = sshrl.u32 %s253, 1
              %s370 = sand.u32 %s253, 1
              %s371 = smul.u32 %s369, 2
              %s372 = smul.u32 1032, %s371
              %s373 = scalar_lea.vmem %s260, %s372
              %s374 = smul.u32 172, %s371
              %s375 = scalar_lea.vmem %s248, %s374 [#allocation6]
              // While loop
              $region48: #{bio0_autoregressive_criterion.1} parent=39 // loop_pre_header
                _
              $region49: #{bio0_autoregressive_criterion.1} parent=39 // loop_header
                %s377 = sphi 0, %s379
                %p378 = scmp.ge.s32.totalorder %s377, %s370
                %s382 = sphi 0, %s429
                %s383 = sphi %s373, %s432
                %s384 = sphi %s375, %s433
              $region50: #{bio0_autoregressive_criterion.1} parent=39 // loop_header_branch
                %381 = sbr.rel (%p378) target = $region54
              $region51: #{bio0_autoregressive_criterion.1} parent=39 // loop_body
                %v385 = vld [vmem:[%s383] sm:$0xff]
                %386 = vst [vmem:[%s384] sm:$0xff] %v385
                %v387 = vld [vmem:[%s383 + $0x8] sm:$0xff]
                %388 = vst [vmem:[%s384 + $0x8] sm:$0xff] %v387
                %v389 = vld [vmem:[%s383 + $0x10] sm:$0xff]
                %390 = vst [vmem:[%s384 + $0x10] sm:$0xff] %v389
                %v391 = vld [vmem:[%s383 + $0x18] sm:$0xff]
                %392 = vst [vmem:[%s384 + $0x18] sm:$0xff] %v391
                %v393 = vld [vmem:[%s383 + $0x20] sm:$0xff]
                %394 = vst [vmem:[%s384 + $0x20] sm:$0xff] %v393
                %v395 = vld [vmem:[%s383 + $0x28] sm:$0xff]
                %396 = vst [vmem:[%s384 + $0x28] sm:$0xff] %v395
                %v397 = vld [vmem:[%s383 + $0x30] sm:$0xff]
                %398 = vst [vmem:[%s384 + $0x30] sm:$0xff] %v397
                %v399 = vld [vmem:[%s383 + $0x38] sm:$0xff]
                %400 = vst [vmem:[%s384 + $0x38] sm:$0xff] %v399
                %v401 = vld [vmem:[%s383 + $0x40] sm:$0xff]
                %402 = vst [vmem:[%s384 + $0x40] sm:$0xff] %v401
                %v403 = vld [vmem:[%s383 + $0x48] sm:$0xff]
                %404 = vst [vmem:[%s384 + $0x48] sm:$0xff] %v403
                %v405 = vld [vmem:[%s383 + $0x50] sm:$0xff]
                %406 = vst [vmem:[%s384 + $0x50] sm:$0xff] %v405
                %v407 = vld [vmem:[%s383 + $0x58] sm:$0xff]
                %408 = vst [vmem:[%s384 + $0x58] sm:$0xff] %v407
                %v409 = vld [vmem:[%s383 + $0x60] sm:$0xff]
                %410 = vst [vmem:[%s384 + $0x60] sm:$0xff] %v409
                %v411 = vld [vmem:[%s383 + $0x68] sm:$0xff]
                %412 = vst [vmem:[%s384 + $0x68] sm:$0xff] %v411
                %v413 = vld [vmem:[%s383 + $0x70] sm:$0xff]
                %414 = vst [vmem:[%s384 + $0x70] sm:$0xff] %v413
                %v415 = vld [vmem:[%s383 + $0x78] sm:$0xff]
                %416 = vst [vmem:[%s384 + $0x78] sm:$0xff] %v415
                %v417 = vld [vmem:[%s383 + $0x80] sm:$0xff]
                %418 = vst [vmem:[%s384 + $0x80] sm:$0xff] %v417
                %v419 = vld [vmem:[%s383 + $0x88] sm:$0xff]
                %420 = vst [vmem:[%s384 + $0x88] sm:$0xff] %v419
                %v421 = vld [vmem:[%s383 + $0x90] sm:$0xff]
                %422 = vst [vmem:[%s384 + $0x90] sm:$0xff] %v421
                %v423 = vld [vmem:[%s383 + $0x98] sm:$0xff]
                %424 = vst [vmem:[%s384 + $0x98] sm:$0xff] %v423
                %v425 = vld [vmem:[%s383 + $0xa0] sm:$0xff]
                %426 = vst [vmem:[%s384 + $0xa0] sm:$0xff] %v425
                %s427 = sadd.s32 1, %s382
                %p428 = scmp.ge.s32.totalorder %s427, %s370
                %s429 = scalar_select %p428, 0, %s427
                %s430 = smul.u32 %s429, 1032
                %s431 = smul.u32 %s429, 172
                %s432 = scalar_lea.vmem %s373, %s430
                %s433 = scalar_lea.vmem %s375, %s431 [#allocation6]
              $region52: #{bio0_autoregressive_criterion.1} parent=39 // loop_footer
                %s379 = sadd.s32 %s377, 1
              $region53: #{bio0_autoregressive_criterion.1} parent=39 // loop_footer_branch
                %376 = sbr.rel target = $region49
              $region54: #{bio0_autoregressive_criterion.1} parent=39 // loop_exit
                _
              %s435 = sshrl.u32 %s253, 1
              // While loop
              $region55: #{bio0_autoregressive_criterion.1} parent=39 // loop_pre_header
                _
              $region56: #{bio0_autoregressive_criterion.1} parent=39 // loop_header
                %s437 = sphi 0, %s439
                %p438 = scmp.ge.s32.totalorder %s437, %s435
                %s442 = sphi 0, %s451
                %s443 = sphi %s266, %s454
                %s444 = sphi %s267, %s455
              $region57: #{bio0_autoregressive_criterion.1} parent=39 // loop_header_branch
                %441 = sbr.rel (%p438) target = $region61
              $region58: #{bio0_autoregressive_criterion.1} parent=39 // loop_body
                %v445 = vld [vmem:[%s443] sm:$0xf]
                %446 = vst [vmem:[%s444] sm:$0xf] %v445
                %v447 = vld [vmem:[%s443 + $0x408] sm:$0xf]
                %448 = vst [vmem:[%s444 + $0xac] sm:$0xf] %v447
                %s449 = sadd.s32 1, %s442
                %p450 = scmp.ge.s32.totalorder %s449, %s435
                %s451 = scalar_select %p450, 0, %s449
                %s452 = smul.u32 %s451, 2064
                %s453 = smul.u32 %s451, 344
                %s454 = scalar_lea.vmem %s266, %s452
                %s455 = scalar_lea.vmem %s267, %s453 [#allocation6]
              $region59: #{bio0_autoregressive_criterion.1} parent=39 // loop_footer
                %s439 = sadd.s32 %s437, 1
              $region60: #{bio0_autoregressive_criterion.1} parent=39 // loop_footer_branch
                %436 = sbr.rel target = $region56
              $region61: #{bio0_autoregressive_criterion.1} parent=39 // loop_exit
                _
              %s456 = sshrl.u32 %s253, 1
              %s457 = sand.u32 %s253, 1
              %s458 = smul.u32 %s456, 2
              %s459 = smul.u32 1032, %s458
              %s460 = scalar_lea.vmem %s266, %s459
              %s461 = smul.u32 172, %s458
              %s462 = scalar_lea.vmem %s267, %s461 [#allocation6]
              // While loop
              $region62: #{bio0_autoregressive_criterion.1} parent=39 // loop_pre_header
                _
              $region63: #{bio0_autoregressive_criterion.1} parent=39 // loop_header
                %s464 = sphi 0, %s466
                %p465 = scmp.ge.s32.totalorder %s464, %s457
                %s469 = sphi 0, %s476
                %s470 = sphi %s460, %s479
                %s471 = sphi %s462, %s480
              $region64: #{bio0_autoregressive_criterion.1} parent=39 // loop_header_branch
                %468 = sbr.rel (%p465) target = $region68
              $region65: #{bio0_autoregressive_criterion.1} parent=39 // loop_body
                %v472 = vld [vmem:[%s470] sm:$0xf]
                %473 = vst [vmem:[%s471] sm:$0xf] %v472
                %s474 = sadd.s32 1, %s469
                %p475 = scmp.ge.s32.totalorder %s474, %s457
                %s476 = scalar_select %p475, 0, %s474
                %s477 = smul.u32 %s476, 1032
                %s478 = smul.u32 %s476, 172
                %s479 = scalar_lea.vmem %s460, %s477
                %s480 = scalar_lea.vmem %s462, %s478 [#allocation6]
              $region66: #{bio0_autoregressive_criterion.1} parent=39 // loop_footer
                %s466 = sadd.s32 %s464, 1
              $region67: #{bio0_autoregressive_criterion.1} parent=39 // loop_footer_branch
                %463 = sbr.rel target = $region63
              $region68: #{bio0_autoregressive_criterion.1} parent=39 // loop_exit
                _
            $region40: #{bio0_autoregressive_criterion.1} parent=35 // pred_fallthru
              _
          $region36: #{bio0_autoregressive_criterion.1} parent=31 // pred_fallthru
            _
          %481 = vnop
        $region32: #{bio0_autoregressive_criterion.1} parent=15 // pred_fallthru
          _
        // Predicated region
        $region69: #{bio0_autoregressive_criterion.1} parent=15 // pred_check
          %p482 = pneg %p164
        $region70: #{bio0_autoregressive_criterion.1} parent=15 // pred_check_branch
          %484 = sbr.rel (%p482) target = $region72
        $region71: #{bio0_autoregressive_criterion.1} parent=15 // pred_region
          %s485 = sand.u32 %s154, 1
          %s486 = sand.u32 %s154, 1
          %s487 = smul.addr %s486, 344
          %s488 = scalar_lea.vmem [#allocation7], %s487
          %s489 = sld [smem:[#allocation5 + %s25]]
          %s490 = smul.u32 %s25, %s489
          %s491 = smul.u32 %s26, %s489
          %s492 = smul.u32 2, %s490
          %s493 = smul.u32 43, %s491
          %s494 = ssub.s32 3, %s492
          %p495 = scmp.lt.s32.totalorder %s494, 2
          %s496 = scalar_select %p495, %s494, 2
          %s497 = smul.u32 64, %s496
          %s498 = smul.u32 %s497, 43
          %p499 = scmp.ne.s32.totalorder 0, %s498
          %s500 = smul.addr %s492, 258
          %s501 = sadd.s32 %s493, %s500
          %s502 = smul.addr %s501, 4
          %s503 = scalar_lea.vmem %s5, %s502
          // Predicated region
          $region73: #{bio0_autoregressive_criterion.1} parent=71 // pred_check
            %p504 = pneg %p499
          $region74: #{bio0_autoregressive_criterion.1} parent=71 // pred_check_branch
            %506 = sbr.rel (%p504) target = $region76
          $region75: #{bio0_autoregressive_criterion.1} parent=71 // pred_region
            // Predicated region
            $region77: #{bio0_autoregressive_criterion.1} parent=75 // pred_check
              _
            $region78: #{bio0_autoregressive_criterion.1} parent=75 // pred_check_branch
              %508 = sbr.rel (0) target = $region80
            $region79: #{bio0_autoregressive_criterion.1} parent=75 // pred_region
              %s509 = scalar_lea.vmem %s503, 168
              %s510 = scalar_lea.vmem %s488, 168 [#allocation7]
              %s511 = sshrl.u32 %s496, 1
              // While loop
              $region81: #{bio0_autoregressive_criterion.1} parent=79 // loop_pre_header
                _
              $region82: #{bio0_autoregressive_criterion.1} parent=79 // loop_header
                %s513 = sphi 0, %s515
                %p514 = scmp.ge.s32.totalorder %s513, %s511
                %s518 = sphi 0, %s607
                %s519 = sphi %s503, %s610
                %s520 = sphi %s488, %s611
              $region83: #{bio0_autoregressive_criterion.1} parent=79 // loop_header_branch
                %517 = sbr.rel (%p514) target = $region87
              $region84: #{bio0_autoregressive_criterion.1} parent=79 // loop_body
                %v521 = vld [vmem:[%s519] sm:$0xff]
                %522 = vst [vmem:[%s520] sm:$0xff] %v521
                %v523 = vld [vmem:[%s519 + $0x408] sm:$0xff]
                %524 = vst [vmem:[%s520 + $0xac] sm:$0xff] %v523
                %v525 = vld [vmem:[%s519 + $0x8] sm:$0xff]
                %526 = vst [vmem:[%s520 + $0x8] sm:$0xff] %v525
                %v527 = vld [vmem:[%s519 + $0x410] sm:$0xff]
                %528 = vst [vmem:[%s520 + $0xb4] sm:$0xff] %v527
                %v529 = vld [vmem:[%s519 + $0x10] sm:$0xff]
                %530 = vst [vmem:[%s520 + $0x10] sm:$0xff] %v529
                %v531 = vld [vmem:[%s519 + $0x418] sm:$0xff]
                %532 = vst [vmem:[%s520 + $0xbc] sm:$0xff] %v531
                %v533 = vld [vmem:[%s519 + $0x18] sm:$0xff]
                %534 = vst [vmem:[%s520 + $0x18] sm:$0xff] %v533
                %v535 = vld [vmem:[%s519 + $0x420] sm:$0xff]
                %536 = vst [vmem:[%s520 + $0xc4] sm:$0xff] %v535
                %v537 = vld [vmem:[%s519 + $0x20] sm:$0xff]
                %538 = vst [vmem:[%s520 + $0x20] sm:$0xff] %v537
                %v539 = vld [vmem:[%s519 + $0x428] sm:$0xff]
                %540 = vst [vmem:[%s520 + $0xcc] sm:$0xff] %v539
                %v541 = vld [vmem:[%s519 + $0x28] sm:$0xff]
                %542 = vst [vmem:[%s520 + $0x28] sm:$0xff] %v541
                %v543 = vld [vmem:[%s519 + $0x430] sm:$0xff]
                %544 = vst [vmem:[%s520 + $0xd4] sm:$0xff] %v543
                %v545 = vld [vmem:[%s519 + $0x30] sm:$0xff]
                %546 = vst [vmem:[%s520 + $0x30] sm:$0xff] %v545
                %v547 = vld [vmem:[%s519 + $0x438] sm:$0xff]
                %548 = vst [vmem:[%s520 + $0xdc] sm:$0xff] %v547
                %v549 = vld [vmem:[%s519 + $0x38] sm:$0xff]
                %550 = vst [vmem:[%s520 + $0x38] sm:$0xff] %v549
                %v551 = vld [vmem:[%s519 + $0x440] sm:$0xff]
                %552 = vst [vmem:[%s520 + $0xe4] sm:$0xff] %v551
                %v553 = vld [vmem:[%s519 + $0x40] sm:$0xff]
                %554 = vst [vmem:[%s520 + $0x40] sm:$0xff] %v553
                %v555 = vld [vmem:[%s519 + $0x448] sm:$0xff]
                %556 = vst [vmem:[%s520 + $0xec] sm:$0xff] %v555
                %v557 = vld [vmem:[%s519 + $0x48] sm:$0xff]
                %558 = vst [vmem:[%s520 + $0x48] sm:$0xff] %v557
                %v559 = vld [vmem:[%s519 + $0x450] sm:$0xff]
                %560 = vst [vmem:[%s520 + $0xf4] sm:$0xff] %v559
                %v561 = vld [vmem:[%s519 + $0x50] sm:$0xff]
                %562 = vst [vmem:[%s520 + $0x50] sm:$0xff] %v561
                %v563 = vld [vmem:[%s519 + $0x458] sm:$0xff]
                %564 = vst [vmem:[%s520 + $0xfc] sm:$0xff] %v563
                %v565 = vld [vmem:[%s519 + $0x58] sm:$0xff]
                %566 = vst [vmem:[%s520 + $0x58] sm:$0xff] %v565
                %v567 = vld [vmem:[%s519 + $0x460] sm:$0xff]
                %568 = vst [vmem:[%s520 + $0x104] sm:$0xff] %v567
                %v569 = vld [vmem:[%s519 + $0x60] sm:$0xff]
                %570 = vst [vmem:[%s520 + $0x60] sm:$0xff] %v569
                %v571 = vld [vmem:[%s519 + $0x468] sm:$0xff]
                %572 = vst [vmem:[%s520 + $0x10c] sm:$0xff] %v571
                %v573 = vld [vmem:[%s519 + $0x68] sm:$0xff]
                %574 = vst [vmem:[%s520 + $0x68] sm:$0xff] %v573
                %v575 = vld [vmem:[%s519 + $0x470] sm:$0xff]
                %576 = vst [vmem:[%s520 + $0x114] sm:$0xff] %v575
                %v577 = vld [vmem:[%s519 + $0x70] sm:$0xff]
                %578 = vst [vmem:[%s520 + $0x70] sm:$0xff] %v577
                %v579 = vld [vmem:[%s519 + $0x478] sm:$0xff]
                %580 = vst [vmem:[%s520 + $0x11c] sm:$0xff] %v579
                %v581 = vld [vmem:[%s519 + $0x78] sm:$0xff]
                %582 = vst [vmem:[%s520 + $0x78] sm:$0xff] %v581
                %v583 = vld [vmem:[%s519 + $0x480] sm:$0xff]
                %584 = vst [vmem:[%s520 + $0x124] sm:$0xff] %v583
                %v585 = vld [vmem:[%s519 + $0x80] sm:$0xff]
                %586 = vst [vmem:[%s520 + $0x80] sm:$0xff] %v585
                %v587 = vld [vmem:[%s519 + $0x488] sm:$0xff]
                %588 = vst [vmem:[%s520 + $0x12c] sm:$0xff] %v587
                %v589 = vld [vmem:[%s519 + $0x88] sm:$0xff]
                %590 = vst [vmem:[%s520 + $0x88] sm:$0xff] %v589
                %v591 = vld [vmem:[%s519 + $0x490] sm:$0xff]
                %592 = vst [vmem:[%s520 + $0x134] sm:$0xff] %v591
                %v593 = vld [vmem:[%s519 + $0x90] sm:$0xff]
                %594 = vst [vmem:[%s520 + $0x90] sm:$0xff] %v593
                %v595 = vld [vmem:[%s519 + $0x498] sm:$0xff]
                %596 = vst [vmem:[%s520 + $0x13c] sm:$0xff] %v595
                %v597 = vld [vmem:[%s519 + $0x98] sm:$0xff]
                %598 = vst [vmem:[%s520 + $0x98] sm:$0xff] %v597
                %v599 = vld [vmem:[%s519 + $0x4a0] sm:$0xff]
                %600 = vst [vmem:[%s520 + $0x144] sm:$0xff] %v599
                %v601 = vld [vmem:[%s519 + $0xa0] sm:$0xff]
                %602 = vst [vmem:[%s520 + $0xa0] sm:$0xff] %v601
                %v603 = vld [vmem:[%s519 + $0x4a8] sm:$0xff]
                %604 = vst [vmem:[%s520 + $0x14c] sm:$0xff] %v603
                %s605 = sadd.s32 1, %s518
                %p606 = scmp.ge.s32.totalorder %s605, %s511
                %s607 = scalar_select %p606, 0, %s605
                %s608 = smul.u32 %s607, 2064
                %s609 = smul.u32 %s607, 344
                %s610 = scalar_lea.vmem %s503, %s608
                %s611 = scalar_lea.vmem %s488, %s609 [#allocation7]
              $region85: #{bio0_autoregressive_criterion.1} parent=79 // loop_footer
                %s515 = sadd.s32 %s513, 1
              $region86: #{bio0_autoregressive_criterion.1} parent=79 // loop_footer_branch
                %512 = sbr.rel target = $region82
              $region87: #{bio0_autoregressive_criterion.1} parent=79 // loop_exit
                _
              %s612 = sshrl.u32 %s496, 1
              %s613 = sand.u32 %s496, 1
              %s614 = smul.u32 %s612, 2
              %s615 = smul.u32 1032, %s614
              %s616 = scalar_lea.vmem %s503, %s615
              %s617 = smul.u32 172, %s614
              %s618 = scalar_lea.vmem %s488, %s617 [#allocation7]
              // While loop
              $region88: #{bio0_autoregressive_criterion.1} parent=79 // loop_pre_header
                _
              $region89: #{bio0_autoregressive_criterion.1} parent=79 // loop_header
                %s620 = sphi 0, %s622
                %p621 = scmp.ge.s32.totalorder %s620, %s613
                %s625 = sphi 0, %s672
                %s626 = sphi %s616, %s675
                %s627 = sphi %s618, %s676
              $region90: #{bio0_autoregressive_criterion.1} parent=79 // loop_header_branch
                %624 = sbr.rel (%p621) target = $region94
              $region91: #{bio0_autoregressive_criterion.1} parent=79 // loop_body
                %v628 = vld [vmem:[%s626] sm:$0xff]
                %629 = vst [vmem:[%s627] sm:$0xff] %v628
                %v630 = vld [vmem:[%s626 + $0x8] sm:$0xff]
                %631 = vst [vmem:[%s627 + $0x8] sm:$0xff] %v630
                %v632 = vld [vmem:[%s626 + $0x10] sm:$0xff]
                %633 = vst [vmem:[%s627 + $0x10] sm:$0xff] %v632
                %v634 = vld [vmem:[%s626 + $0x18] sm:$0xff]
                %635 = vst [vmem:[%s627 + $0x18] sm:$0xff] %v634
                %v636 = vld [vmem:[%s626 + $0x20] sm:$0xff]
                %637 = vst [vmem:[%s627 + $0x20] sm:$0xff] %v636
                %v638 = vld [vmem:[%s626 + $0x28] sm:$0xff]
                %639 = vst [vmem:[%s627 + $0x28] sm:$0xff] %v638
                %v640 = vld [vmem:[%s626 + $0x30] sm:$0xff]
                %641 = vst [vmem:[%s627 + $0x30] sm:$0xff] %v640
                %v642 = vld [vmem:[%s626 + $0x38] sm:$0xff]
                %643 = vst [vmem:[%s627 + $0x38] sm:$0xff] %v642
                %v644 = vld [vmem:[%s626 + $0x40] sm:$0xff]
                %645 = vst [vmem:[%s627 + $0x40] sm:$0xff] %v644
                %v646 = vld [vmem:[%s626 + $0x48] sm:$0xff]
                %647 = vst [vmem:[%s627 + $0x48] sm:$0xff] %v646
                %v648 = vld [vmem:[%s626 + $0x50] sm:$0xff]
                %649 = vst [vmem:[%s627 + $0x50] sm:$0xff] %v648
                %v650 = vld [vmem:[%s626 + $0x58] sm:$0xff]
                %651 = vst [vmem:[%s627 + $0x58] sm:$0xff] %v650
                %v652 = vld [vmem:[%s626 + $0x60] sm:$0xff]
                %653 = vst [vmem:[%s627 + $0x60] sm:$0xff] %v652
                %v654 = vld [vmem:[%s626 + $0x68] sm:$0xff]
                %655 = vst [vmem:[%s627 + $0x68] sm:$0xff] %v654
                %v656 = vld [vmem:[%s626 + $0x70] sm:$0xff]
                %657 = vst [vmem:[%s627 + $0x70] sm:$0xff] %v656
                %v658 = vld [vmem:[%s626 + $0x78] sm:$0xff]
                %659 = vst [vmem:[%s627 + $0x78] sm:$0xff] %v658
                %v660 = vld [vmem:[%s626 + $0x80] sm:$0xff]
                %661 = vst [vmem:[%s627 + $0x80] sm:$0xff] %v660
                %v662 = vld [vmem:[%s626 + $0x88] sm:$0xff]
                %663 = vst [vmem:[%s627 + $0x88] sm:$0xff] %v662
                %v664 = vld [vmem:[%s626 + $0x90] sm:$0xff]
                %665 = vst [vmem:[%s627 + $0x90] sm:$0xff] %v664
                %v666 = vld [vmem:[%s626 + $0x98] sm:$0xff]
                %667 = vst [vmem:[%s627 + $0x98] sm:$0xff] %v666
                %v668 = vld [vmem:[%s626 + $0xa0] sm:$0xff]
                %669 = vst [vmem:[%s627 + $0xa0] sm:$0xff] %v668
                %s670 = sadd.s32 1, %s625
                %p671 = scmp.ge.s32.totalorder %s670, %s613
                %s672 = scalar_select %p671, 0, %s670
                %s673 = smul.u32 %s672, 1032
                %s674 = smul.u32 %s672, 172
                %s675 = scalar_lea.vmem %s616, %s673
                %s676 = scalar_lea.vmem %s618, %s674 [#allocation7]
              $region92: #{bio0_autoregressive_criterion.1} parent=79 // loop_footer
                %s622 = sadd.s32 %s620, 1
              $region93: #{bio0_autoregressive_criterion.1} parent=79 // loop_footer_branch
                %619 = sbr.rel target = $region89
              $region94: #{bio0_autoregressive_criterion.1} parent=79 // loop_exit
                _
              %s678 = sshrl.u32 %s496, 1
              // While loop
              $region95: #{bio0_autoregressive_criterion.1} parent=79 // loop_pre_header
                _
              $region96: #{bio0_autoregressive_criterion.1} parent=79 // loop_header
                %s680 = sphi 0, %s682
                %p681 = scmp.ge.s32.totalorder %s680, %s678
                %s685 = sphi 0, %s694
                %s686 = sphi %s509, %s697
                %s687 = sphi %s510, %s698
              $region97: #{bio0_autoregressive_criterion.1} parent=79 // loop_header_branch
                %684 = sbr.rel (%p681) target = $region101
              $region98: #{bio0_autoregressive_criterion.1} parent=79 // loop_body
                %v688 = vld [vmem:[%s686] sm:$0xf]
                %689 = vst [vmem:[%s687] sm:$0xf] %v688
                %v690 = vld [vmem:[%s686 + $0x408] sm:$0xf]
                %691 = vst [vmem:[%s687 + $0xac] sm:$0xf] %v690
                %s692 = sadd.s32 1, %s685
                %p693 = scmp.ge.s32.totalorder %s692, %s678
                %s694 = scalar_select %p693, 0, %s692
                %s695 = smul.u32 %s694, 2064
                %s696 = smul.u32 %s694, 344
                %s697 = scalar_lea.vmem %s509, %s695
                %s698 = scalar_lea.vmem %s510, %s696 [#allocation7]
              $region99: #{bio0_autoregressive_criterion.1} parent=79 // loop_footer
                %s682 = sadd.s32 %s680, 1
              $region100: #{bio0_autoregressive_criterion.1} parent=79 // loop_footer_branch
                %679 = sbr.rel target = $region96
              $region101: #{bio0_autoregressive_criterion.1} parent=79 // loop_exit
                _
              %s699 = sshrl.u32 %s496, 1
              %s700 = sand.u32 %s496, 1
              %s701 = smul.u32 %s699, 2
              %s702 = smul.u32 1032, %s701
              %s703 = scalar_lea.vmem %s509, %s702
              %s704 = smul.u32 172, %s701
              %s705 = scalar_lea.vmem %s510, %s704 [#allocation7]
              // While loop
              $region102: #{bio0_autoregressive_criterion.1} parent=79 // loop_pre_header
                _
              $region103: #{bio0_autoregressive_criterion.1} parent=79 // loop_header
                %s707 = sphi 0, %s709
                %p708 = scmp.ge.s32.totalorder %s707, %s700
                %s712 = sphi 0, %s719
                %s713 = sphi %s703, %s722
                %s714 = sphi %s705, %s723
              $region104: #{bio0_autoregressive_criterion.1} parent=79 // loop_header_branch
                %711 = sbr.rel (%p708) target = $region108
              $region105: #{bio0_autoregressive_criterion.1} parent=79 // loop_body
                %v715 = vld [vmem:[%s713] sm:$0xf]
                %716 = vst [vmem:[%s714] sm:$0xf] %v715
                %s717 = sadd.s32 1, %s712
                %p718 = scmp.ge.s32.totalorder %s717, %s700
                %s719 = scalar_select %p718, 0, %s717
                %s720 = smul.u32 %s719, 1032
                %s721 = smul.u32 %s719, 172
                %s722 = scalar_lea.vmem %s703, %s720
                %s723 = scalar_lea.vmem %s705, %s721 [#allocation7]
              $region106: #{bio0_autoregressive_criterion.1} parent=79 // loop_footer
                %s709 = sadd.s32 %s707, 1
              $region107: #{bio0_autoregressive_criterion.1} parent=79 // loop_footer_branch
                %706 = sbr.rel target = $region103
              $region108: #{bio0_autoregressive_criterion.1} parent=79 // loop_exit
                _
            $region80: #{bio0_autoregressive_criterion.1} parent=75 // pred_fallthru
              _
          $region76: #{bio0_autoregressive_criterion.1} parent=71 // pred_fallthru
            _
          %724 = vnop
        $region72: #{bio0_autoregressive_criterion.1} parent=15 // pred_fallthru
          _
      $region16: #{bio0_autoregressive_criterion.1} parent=5 // pred_fallthru
        _
      %p725 = scmp.le.s32.totalorder 1, %s18
      %p726 = scmp.lt.s32.totalorder %s18, 13
      %p727 = pnand %p725, %p726
      %p728 = pneg %p727
      // Predicated region
      $region109: #{bio0_autoregressive_criterion.1} parent=5 // pred_check
        _
      $region110: #{bio0_autoregressive_criterion.1} parent=5 // pred_check_branch
        %730 = sbr.rel (%p727) target = $region112
      $region111: #{bio0_autoregressive_criterion.1} parent=5 // pred_region
        %s731 = ssub.s32 %s18, 1
        %s732 = sand.u32 %s123, 1
        %s733 = sand.u32 %s123, 1
        %s734 = smul.addr %s733, 344
        %s735 = scalar_lea.vmem [#allocation6], %s734
        // Predicated region
        $region113: #{bio0_autoregressive_criterion.1} parent=111 // pred_check
          %p736 = pneg %p136
        $region114: #{bio0_autoregressive_criterion.1} parent=111 // pred_check_branch
          %738 = sbr.rel (%p736) target = $region116
        $region115: #{bio0_autoregressive_criterion.1} parent=111 // pred_region
          _
        $region116: #{bio0_autoregressive_criterion.1} parent=111 // pred_fallthru
          _
        %s739 = sand.u32 %s157, 1
        %s740 = sand.u32 %s157, 1
        %s741 = smul.addr %s740, 344
        %s742 = scalar_lea.vmem [#allocation7], %s741
        // Predicated region
        $region117: #{bio0_autoregressive_criterion.1} parent=111 // pred_check
          %p743 = pneg %p170
        $region118: #{bio0_autoregressive_criterion.1} parent=111 // pred_check_branch
          %745 = sbr.rel (%p743) target = $region120
        $region119: #{bio0_autoregressive_criterion.1} parent=111 // pred_region
          _
        $region120: #{bio0_autoregressive_criterion.1} parent=111 // pred_fallthru
          _
        %s746 = smul.u32 2, %s27
        %p747 = scmp.lt.s32.totalorder %s746, 3
        %s748 = scalar_select %p747, %s746, 3
        %s749 = smul.addr %s748, 8
        %s750 = scalar_lea.vmem %s1, %s749
        %p751 = pneg %p56
        %p752 = pneg %p53
        %s753 = smul.u32 2, %s27
        %p754 = scmp.lt.s32.totalorder %s753, 3
        %s755 = scalar_select %p754, %s753, 3
        %s756 = smul.addr %s755, 8
        %s757 = scalar_lea.vmem %s2, %s756
        %p758 = pneg %p82
        %p759 = pneg %p79
        %s760 = smul.u32 2, %s27
        %p761 = scmp.lt.s32.totalorder %s760, 3
        %s762 = scalar_select %p761, %s760, 3
        %s763 = smul.addr %s762, 8
        %s764 = scalar_lea.vmem %s3, %s763
        %p765 = pneg %p108
        %p766 = pneg %p105
        %s767 = sand.u32 %s123, 1
        %s768 = sand.u32 %s123, 1
        %s769 = smul.addr %s768, 344
        %s770 = scalar_lea.vmem [#allocation6], %s769
        %p771 = pneg %p136
        %p772 = pneg %p133
        %s773 = sand.u32 %s157, 1
        %s774 = sand.u32 %s157, 1
        %s775 = smul.addr %s774, 344
        %s776 = scalar_lea.vmem [#allocation7], %s775
        %p777 = pneg %p170
        %p778 = pneg %p167
        %p779 = pneg %p196
        %p780 = pneg %p193
        %p781 = scmp.lt.s32.totalorder %s27, 1
        %s782 = scalar_select %p781, %s27, 1
        %s783 = smul.addr %s782, 2
        %s784 = scalar_lea.vmem %s6, %s783
        %s785 = smul.u32 2, %s27
        %p786 = scmp.lt.s32.totalorder %s785, 3
        %s787 = scalar_select %p786, %s785, 3
        %s788 = smul.addr %s787, 8
        %s789 = scalar_lea.vmem %s1, %s788
        %s790 = smul.u32 2, %s27
        %s791 = smul.u32 2, %s27
        %p792 = scmp.lt.s32.totalorder %s791, 3
        %s793 = scalar_select %p792, %s791, 3
        %s794 = smul.addr %s793, 8
        %s795 = scalar_lea.vmem %s2, %s794
        %s796 = smul.u32 2, %s27
        %s797 = smul.u32 2, %s27
        %p798 = scmp.lt.s32.totalorder %s797, 3
        %s799 = scalar_select %p798, %s797, 3
        %s800 = smul.addr %s799, 8
        %s801 = scalar_lea.vmem %s3, %s800
        %s802 = smul.u32 2, %s27
        %s803 = smul.u32 2, %s27
        %s804 = smul.u32 43, %s28
        %s805 = ssub.s32 3, %s803
        %p806 = scmp.lt.s32.totalorder %s805, 2
        %s807 = scalar_select %p806, %s805, 2
        %s808 = smul.u32 64, %s807
        %s809 = smul.u32 %s808, 43
        %s810 = sld [smem:[#allocation5 + %s27]]
        %s811 = smul.u32 %s27, %s810
        %s812 = smul.u32 %s28, %s810
        %s813 = smul.u32 2, %s811
        %s814 = smul.u32 43, %s812
        %s815 = ssub.s32 3, %s813
        %p816 = scmp.lt.s32.totalorder %s815, 2
        %s817 = scalar_select %p816, %s815, 2
        %s818 = smul.u32 64, %s817
        %s819 = smul.u32 %s818, 43
        %p820 = scmp.lt.s32.totalorder %s27, 1
        %s821 = scalar_select %p820, %s27, 1
        %s822 = smul.addr %s821, 2
        %s823 = scalar_lea.vmem %s6, %s822
        %p824 = scmp.eq.s32.totalorder %s28, 0
        // Predicated region
        $region121: #{bio0_autoregressive_criterion.1} parent=111 // pred_check
          %p825 = pneg %p824
        $region122: #{bio0_autoregressive_criterion.1} parent=111 // pred_check_branch
          %827 = sbr.rel (%p825) target = $region124
        $region123: #{bio0_autoregressive_criterion.1} parent=111 // pred_region
          %vm828 = vcmask 7168
          %829 = vst.msk [vmem:[#allocation2] sm:$0xff] %vm828, -inf
          %830 = vst.msk [vmem:[#allocation2 + $0x8] sm:$0xff] %vm828, -inf
          %831 = vst.msk [vmem:[#allocation3] sm:$0xff] %vm828, 0.0
          %832 = vst.msk [vmem:[#allocation3 + $0x8] sm:$0xff] %vm828, 0.0
        $region124: #{bio0_autoregressive_criterion.1} parent=111 // pred_fallthru
          _
        %s833 = sld [smem:[#allocation5 + %s27]]
        %p834 = scmp.ne.s32.totalorder %s833, 0
        // Predicated region
        $region125: #{bio0_autoregressive_criterion.1} parent=111 // pred_check
          %p835 = pneg %p834
        $region126: #{bio0_autoregressive_criterion.1} parent=111 // pred_check_branch
          %837 = sbr.rel (%p835) target = $region128
        $region127: #{bio0_autoregressive_criterion.1} parent=111 // pred_region
          %v838 = vld [vmem:[%s795] sm:$0xff]
          %v839 = vld [vmem:[%s795 + $0x8] sm:$0xff]
          %vm840 = vcmp.gt.s32.totalorder %v838, 32000
          %vm841 = vcmp.gt.s32.totalorder %v839, 32000
          %v842 = vld [vmem:[%s742] sm:$0xff]
          %v843 = vld [vmem:[%s742 + $0x8] sm:$0xff]
          %v844 = vld [vmem:[%s742 + $0x10] sm:$0xff]
          %v845 = vld [vmem:[%s742 + $0x18] sm:$0xff]
          %v846 = vld [vmem:[%s742 + $0x20] sm:$0xff]
          %v847 = vld [vmem:[%s742 + $0x28] sm:$0xff]
          %v848 = vld [vmem:[%s742 + $0x30] sm:$0xff]
          %v849 = vld [vmem:[%s742 + $0x38] sm:$0xff]
          %v850 = vld [vmem:[%s742 + $0x40] sm:$0xff]
          %v851 = vld [vmem:[%s742 + $0x48] sm:$0xff]
          %v852 = vld [vmem:[%s742 + $0x50] sm:$0xff]
          %v853 = vld [vmem:[%s742 + $0x58] sm:$0xff]
          %v854 = vld [vmem:[%s742 + $0x60] sm:$0xff]
          %v855 = vld [vmem:[%s742 + $0x68] sm:$0xff]
          %v856 = vld [vmem:[%s742 + $0x70] sm:$0xff]
          %v857 = vld [vmem:[%s742 + $0x78] sm:$0xff]
          %v858 = vld [vmem:[%s742 + $0x80] sm:$0xff]
          %v859 = vld [vmem:[%s742 + $0x88] sm:$0xff]
          %v860 = vld [vmem:[%s742 + $0x90] sm:$0xff]
          %v861 = vld [vmem:[%s742 + $0x98] sm:$0xff]
          %v862 = vld [vmem:[%s742 + $0xa0] sm:$0xff]
          %v863 = vld [vmem:[%s742 + $0xa8] sm:$0xf]
          %v864 = vld [vmem:[%s742 + $0xac] sm:$0xff]
          %v865 = vld [vmem:[%s742 + $0xb4] sm:$0xff]
          %v866 = vld [vmem:[%s742 + $0xbc] sm:$0xff]
          %v867 = vld [vmem:[%s742 + $0xc4] sm:$0xff]
          %v868 = vld [vmem:[%s742 + $0xcc] sm:$0xff]
          %v869 = vld [vmem:[%s742 + $0xd4] sm:$0xff]
          %v870 = vld [vmem:[%s742 + $0xdc] sm:$0xff]
          %v871 = vld [vmem:[%s742 + $0xe4] sm:$0xff]
          %v872 = vld [vmem:[%s742 + $0xec] sm:$0xff]
          %v873 = vld [vmem:[%s742 + $0xf4] sm:$0xff]
          %v874 = vld [vmem:[%s742 + $0xfc] sm:$0xff]
          %v875 = vld [vmem:[%s742 + $0x104] sm:$0xff]
          %v876 = vld [vmem:[%s742 + $0x10c] sm:$0xff]
          %v877 = vld [vmem:[%s742 + $0x114] sm:$0xff]
          %v878 = vld [vmem:[%s742 + $0x11c] sm:$0xff]
          %v879 = vld [vmem:[%s742 + $0x124] sm:$0xff]
          %v880 = vld [vmem:[%s742 + $0x12c] sm:$0xff]
          %v881 = vld [vmem:[%s742 + $0x134] sm:$0xff]
          %v882 = vld [vmem:[%s742 + $0x13c] sm:$0xff]
          %v883 = vld [vmem:[%s742 + $0x144] sm:$0xff]
          %v884 = vld [vmem:[%s742 + $0x14c] sm:$0xff]
          %v885 = vld [vmem:[%s742 + $0x154] sm:$0xf]
          %v886 = vld [vmem:[%s735] sm:$0xff]
          %v887 = vld [vmem:[%s735 + $0x8] sm:$0xff]
          %v888 = vld [vmem:[%s735 + $0x10] sm:$0xff]
          %v889 = vld [vmem:[%s735 + $0x18] sm:$0xff]
          %v890 = vld [vmem:[%s735 + $0x20] sm:$0xff]
          %v891 = vld [vmem:[%s735 + $0x28] sm:$0xff]
          %v892 = vld [vmem:[%s735 + $0x30] sm:$0xff]
          %v893 = vld [vmem:[%s735 + $0x38] sm:$0xff]
          %v894 = vld [vmem:[%s735 + $0x40] sm:$0xff]
          %v895 = vld [vmem:[%s735 + $0x48] sm:$0xff]
          %v896 = vld [vmem:[%s735 + $0x50] sm:$0xff]
          %v897 = vld [vmem:[%s735 + $0x58] sm:$0xff]
          %v898 = vld [vmem:[%s735 + $0x60] sm:$0xff]
          %v899 = vld [vmem:[%s735 + $0x68] sm:$0xff]
          %v900 = vld [vmem:[%s735 + $0x70] sm:$0xff]
          %v901 = vld [vmem:[%s735 + $0x78] sm:$0xff]
          %v902 = vld [vmem:[%s735 + $0x80] sm:$0xff]
          %v903 = vld [vmem:[%s735 + $0x88] sm:$0xff]
          %v904 = vld [vmem:[%s735 + $0x90] sm:$0xff]
          %v905 = vld [vmem:[%s735 + $0x98] sm:$0xff]
          %v906 = vld [vmem:[%s735 + $0xa0] sm:$0xff]
          %v907 = vld [vmem:[%s735 + $0xa8] sm:$0xf]
          %v908 = vld [vmem:[%s735 + $0xac] sm:$0xff]
          %v909 = vld [vmem:[%s735 + $0xb4] sm:$0xff]
          %v910 = vld [vmem:[%s735 + $0xbc] sm:$0xff]
          %v911 = vld [vmem:[%s735 + $0xc4] sm:$0xff]
          %v912 = vld [vmem:[%s735 + $0xcc] sm:$0xff]
          %v913 = vld [vmem:[%s735 + $0xd4] sm:$0xff]
          %v914 = vld [vmem:[%s735 + $0xdc] sm:$0xff]
          %v915 = vld [vmem:[%s735 + $0xe4] sm:$0xff]
          %v916 = vld [vmem:[%s735 + $0xec] sm:$0xff]
          %v917 = vld [vmem:[%s735 + $0xf4] sm:$0xff]
          %v918 = vld [vmem:[%s735 + $0xfc] sm:$0xff]
          %v919 = vld [vmem:[%s735 + $0x104] sm:$0xff]
          %v920 = vld [vmem:[%s735 + $0x10c] sm:$0xff]
          %v921 = vld [vmem:[%s735 + $0x114] sm:$0xff]
          %v922 = vld [vmem:[%s735 + $0x11c] sm:$0xff]
          %v923 = vld [vmem:[%s735 + $0x124] sm:$0xff]
          %v924 = vld [vmem:[%s735 + $0x12c] sm:$0xff]
          %v925 = vld [vmem:[%s735 + $0x134] sm:$0xff]
          %v926 = vld [vmem:[%s735 + $0x13c] sm:$0xff]
          %v927 = vld [vmem:[%s735 + $0x144] sm:$0xff]
          %v928 = vld [vmem:[%s735 + $0x14c] sm:$0xff]
          %v929 = vld [vmem:[%s735 + $0x154] sm:$0xf]
          %v930 = vsel %vm840, 1, 0
          %v931 = vsel %vm841, 1, 0
          %932 = vset.pattern.permute.xlu0 0
          %933 = vperm.xlu0 %932, %v930
          %v934 = vpop.permute.xlu0 %933
          %935 = vset.pattern.permute.xlu0 0
          %936 = vperm.xlu0 %935, %v931
          %v937 = vpop.permute.xlu0 %936
          %vm938 = vcmp.eq.s32.totalorder %v934, 1
          %vm939 = vcmp.eq.s32.totalorder %v937, 1
          %vm940 = vmpackc.low %vm938, %vm938
          %vm941 = vmpackc.low %vm939, %vm939
          %v942 = vsel %vm940, %v842, %v886
          %v943 = vsel %vm940, %v843, %v887
          %v944 = vsel %vm940, %v844, %v888
          %v945 = vsel %vm940, %v845, %v889
          %v946 = vsel %vm940, %v846, %v890
          %v947 = vsel %vm940, %v847, %v891
          %v948 = vsel %vm940, %v848, %v892
          %v949 = vsel %vm940, %v849, %v893
          %v950 = vsel %vm940, %v850, %v894
          %v951 = vsel %vm940, %v851, %v895
          %v952 = vsel %vm940, %v852, %v896
          %v953 = vsel %vm940, %v853, %v897
          %v954 = vsel %vm940, %v854, %v898
          %v955 = vsel %vm940, %v855, %v899
          %v956 = vsel %vm940, %v856, %v900
          %v957 = vsel %vm940, %v857, %v901
          %v958 = vsel %vm940, %v858, %v902
          %v959 = vsel %vm940, %v859, %v903
          %v960 = vsel %vm940, %v860, %v904
          %v961 = vsel %vm940, %v861, %v905
          %v962 = vsel %vm940, %v862, %v906
          %v963 = vsel %vm940, %v863, %v907
          %v964 = vsel %vm941, %v864, %v908
          %v965 = vsel %vm941, %v865, %v909
          %v966 = vsel %vm941, %v866, %v910
          %v967 = vsel %vm941, %v867, %v911
          %v968 = vsel %vm941, %v868, %v912
          %v969 = vsel %vm941, %v869, %v913
          %v970 = vsel %vm941, %v870, %v914
          %v971 = vsel %vm941, %v871, %v915
          %v972 = vsel %vm941, %v872, %v916
          %v973 = vsel %vm941, %v873, %v917
          %v974 = vsel %vm941, %v874, %v918
          %v975 = vsel %vm941, %v875, %v919
          %v976 = vsel %vm941, %v876, %v920
          %v977 = vsel %vm941, %v877, %v921
          %v978 = vsel %vm941, %v878, %v922
          %v979 = vsel %vm941, %v879, %v923
          %v980 = vsel %vm941, %v880, %v924
          %v981 = vsel %vm941, %v881, %v925
          %v982 = vsel %vm941, %v882, %v926
          %v983 = vsel %vm941, %v883, %v927
          %v984 = vsel %vm941, %v884, %v928
          %v985 = vsel %vm941, %v885, %v929
          %v986 = vunpack.c.l.bf16 %v942
          %v987 = vunpack.c.h.bf16 %v942
          %v988 = vunpack.c.l.bf16 %v943
          %v989 = vunpack.c.h.bf16 %v943
          %v990 = vunpack.c.l.bf16 %v944
          %v991 = vunpack.c.h.bf16 %v944
          %v992 = vunpack.c.l.bf16 %v945
          %v993 = vunpack.c.h.bf16 %v945
          %v994 = vunpack.c.l.bf16 %v946
          %v995 = vunpack.c.h.bf16 %v946
          %v996 = vunpack.c.l.bf16 %v947
          %v997 = vunpack.c.h.bf16 %v947
          %v998 = vunpack.c.l.bf16 %v948
          %v999 = vunpack.c.h.bf16 %v948
          %v1000 = vunpack.c.l.bf16 %v949
          %v1001 = vunpack.c.h.bf16 %v949
          %v1002 = vunpack.c.l.bf16 %v950
          %v1003 = vunpack.c.h.bf16 %v950
          %v1004 = vunpack.c.l.bf16 %v951
          %v1005 = vunpack.c.h.bf16 %v951
          %v1006 = vunpack.c.l.bf16 %v952
          %v1007 = vunpack.c.h.bf16 %v952
          %v1008 = vunpack.c.l.bf16 %v953
          %v1009 = vunpack.c.h.bf16 %v953
          %v1010 = vunpack.c.l.bf16 %v954
          %v1011 = vunpack.c.h.bf16 %v954
          %v1012 = vunpack.c.l.bf16 %v955
          %v1013 = vunpack.c.h.bf16 %v955
          %v1014 = vunpack.c.l.bf16 %v956
          %v1015 = vunpack.c.h.bf16 %v956
          %v1016 = vunpack.c.l.bf16 %v957
          %v1017 = vunpack.c.h.bf16 %v957
          %v1018 = vunpack.c.l.bf16 %v958
          %v1019 = vunpack.c.h.bf16 %v958
          %v1020 = vunpack.c.l.bf16 %v959
          %v1021 = vunpack.c.h.bf16 %v959
          %v1022 = vunpack.c.l.bf16 %v960
          %v1023 = vunpack.c.h.bf16 %v960
          %v1024 = vunpack.c.l.bf16 %v961
          %v1025 = vunpack.c.h.bf16 %v961
          %v1026 = vunpack.c.l.bf16 %v962
          %v1027 = vunpack.c.h.bf16 %v962
          %v1028 = vunpack.c.l.bf16 %v963
          %v1029 = vunpack.c.l.bf16 %v964
          %v1030 = vunpack.c.h.bf16 %v964
          %v1031 = vunpack.c.l.bf16 %v965
          %v1032 = vunpack.c.h.bf16 %v965
          %v1033 = vunpack.c.l.bf16 %v966
          %v1034 = vunpack.c.h.bf16 %v966
          %v1035 = vunpack.c.l.bf16 %v967
          %v1036 = vunpack.c.h.bf16 %v967
          %v1037 = vunpack.c.l.bf16 %v968
          %v1038 = vunpack.c.h.bf16 %v968
          %v1039 = vunpack.c.l.bf16 %v969
          %v1040 = vunpack.c.h.bf16 %v969
          %v1041 = vunpack.c.l.bf16 %v970
          %v1042 = vunpack.c.h.bf16 %v970
          %v1043 = vunpack.c.l.bf16 %v971
          %v1044 = vunpack.c.h.bf16 %v971
          %v1045 = vunpack.c.l.bf16 %v972
          %v1046 = vunpack.c.h.bf16 %v972
          %v1047 = vunpack.c.l.bf16 %v973
          %v1048 = vunpack.c.h.bf16 %v973
          %v1049 = vunpack.c.l.bf16 %v974
          %v1050 = vunpack.c.h.bf16 %v974
          %v1051 = vunpack.c.l.bf16 %v975
          %v1052 = vunpack.c.h.bf16 %v975
          %v1053 = vunpack.c.l.bf16 %v976
          %v1054 = vunpack.c.h.bf16 %v976
          %v1055 = vunpack.c.l.bf16 %v977
          %v1056 = vunpack.c.h.bf16 %v977
          %v1057 = vunpack.c.l.bf16 %v978
          %v1058 = vunpack.c.h.bf16 %v978
          %v1059 = vunpack.c.l.bf16 %v979
          %v1060 = vunpack.c.h.bf16 %v979
          %v1061 = vunpack.c.l.bf16 %v980
          %v1062 = vunpack.c.h.bf16 %v980
          %v1063 = vunpack.c.l.bf16 %v981
          %v1064 = vunpack.c.h.bf16 %v981
          %v1065 = vunpack.c.l.bf16 %v982
          %v1066 = vunpack.c.h.bf16 %v982
          %v1067 = vunpack.c.l.bf16 %v983
          %v1068 = vunpack.c.h.bf16 %v983
          %v1069 = vunpack.c.l.bf16 %v984
          %v1070 = vunpack.c.h.bf16 %v984
          %v1071 = vunpack.c.l.bf16 %v985
          %v1072 = vld [vmem:[#allocation2] sm:$0xff]
          %v1073 = vld [vmem:[#allocation2 + $0x8] sm:$0xff]
          %v1074 = vmax.f32 %v986, %v988
          %v1075 = vmax.f32 %v987, %v989
          %v1076 = vmax.f32 %v1074, %v990
          %v1077 = vmax.f32 %v1075, %v991
          %v1078 = vmax.f32 %v1076, %v992
          %v1079 = vmax.f32 %v1077, %v993
          %v1080 = vmax.f32 %v1078, %v994
          %v1081 = vmax.f32 %v1079, %v995
          %v1082 = vmax.f32 %v1080, %v996
          %v1083 = vmax.f32 %v1081, %v997
          %v1084 = vmax.f32 %v1082, %v998
          %v1085 = vmax.f32 %v1083, %v999
          %v1086 = vmax.f32 %v1084, %v1000
          %v1087 = vmax.f32 %v1085, %v1001
          %v1088 = vmax.f32 %v1086, %v1002
          %v1089 = vmax.f32 %v1087, %v1003
          %v1090 = vmax.f32 %v1088, %v1004
          %v1091 = vmax.f32 %v1089, %v1005
          %v1092 = vmax.f32 %v1090, %v1006
          %v1093 = vmax.f32 %v1091, %v1007
          %v1094 = vmax.f32 %v1092, %v1008
          %v1095 = vmax.f32 %v1093, %v1009
          %v1096 = vmax.f32 %v1094, %v1010
          %v1097 = vmax.f32 %v1095, %v1011
          %v1098 = vmax.f32 %v1096, %v1012
          %v1099 = vmax.f32 %v1097, %v1013
          %v1100 = vmax.f32 %v1098, %v1014
          %v1101 = vmax.f32 %v1099, %v1015
          %v1102 = vmax.f32 %v1100, %v1016
          %v1103 = vmax.f32 %v1101, %v1017
          %v1104 = vmax.f32 %v1102, %v1018
          %v1105 = vmax.f32 %v1103, %v1019
          %v1106 = vmax.f32 %v1104, %v1020
          %v1107 = vmax.f32 %v1105, %v1021
          %v1108 = vmax.f32 %v1106, %v1022
          %v1109 = vmax.f32 %v1107, %v1023
          %v1110 = vmax.f32 %v1108, %v1024
          %v1111 = vmax.f32 %v1109, %v1025
          %v1112 = vmax.f32 %v1110, %v1026
          %v1113 = vmax.f32 %v1111, %v1027
          %v1114 = vmax.f32 %v1112, %v1028
          %v1115 = vmax.f32 %v1114, %v1113
          %1116 = vmax.xlane.f32.xlu0 %v1115
          %v1117 = vpop.xlane.xlu0 %1116
          %v1118 = vmax.f32 %v1029, %v1031
          %v1119 = vmax.f32 %v1030, %v1032
          %v1120 = vmax.f32 %v1118, %v1033
          %v1121 = vmax.f32 %v1119, %v1034
          %v1122 = vmax.f32 %v1120, %v1035
          %v1123 = vmax.f32 %v1121, %v1036
          %v1124 = vmax.f32 %v1122, %v1037
          %v1125 = vmax.f32 %v1123, %v1038
          %v1126 = vmax.f32 %v1124, %v1039
          %v1127 = vmax.f32 %v1125, %v1040
          %v1128 = vmax.f32 %v1126, %v1041
          %v1129 = vmax.f32 %v1127, %v1042
          %v1130 = vmax.f32 %v1128, %v1043
          %v1131 = vmax.f32 %v1129, %v1044
          %v1132 = vmax.f32 %v1130, %v1045
          %v1133 = vmax.f32 %v1131, %v1046
          %v1134 = vmax.f32 %v1132, %v1047
          %v1135 = vmax.f32 %v1133, %v1048
          %v1136 = vmax.f32 %v1134, %v1049
          %v1137 = vmax.f32 %v1135, %v1050
          %v1138 = vmax.f32 %v1136, %v1051
          %v1139 = vmax.f32 %v1137, %v1052
          %v1140 = vmax.f32 %v1138, %v1053
          %v1141 = vmax.f32 %v1139, %v1054
          %v1142 = vmax.f32 %v1140, %v1055
          %v1143 = vmax.f32 %v1141, %v1056
          %v1144 = vmax.f32 %v1142, %v1057
          %v1145 = vmax.f32 %v1143, %v1058
          %v1146 = vmax.f32 %v1144, %v1059
          %v1147 = vmax.f32 %v1145, %v1060
          %v1148 = vmax.f32 %v1146, %v1061
          %v1149 = vmax.f32 %v1147, %v1062
          %v1150 = vmax.f32 %v1148, %v1063
          %v1151 = vmax.f32 %v1149, %v1064
          %v1152 = vmax.f32 %v1150, %v1065
          %v1153 = vmax.f32 %v1151, %v1066
          %v1154 = vmax.f32 %v1152, %v1067
          %v1155 = vmax.f32 %v1153, %v1068
          %v1156 = vmax.f32 %v1154, %v1069
          %v1157 = vmax.f32 %v1155, %v1070
          %v1158 = vmax.f32 %v1156, %v1071
          %v1159 = vmax.f32 %v1158, %v1157
          %1160 = vmax.xlane.f32.xlu0 %v1159
          %v1161 = vpop.xlane.xlu0 %1160
          %v1162 = vmax.f32 %v1072, %v1117
          %v1163 = vmax.f32 %v1073, %v1161
          %v1164 = vld [vmem:[#allocation3] sm:$0xff]
          %v1165 = vld [vmem:[#allocation3 + $0x8] sm:$0xff]
          %v1166 = vsub.f32 %v1072, %v1162
          %v1167 = vsub.f32 %v1073, %v1163
          %v1168 = vmul.f32 %v1166, 1.442695
          %v1169 = vpow.pop %v1168
          %v1170 = vmul.f32 %v1167, 1.442695
          %v1171 = vpow.pop %v1170
          %v1172 = vmul.f32 %v1164, %v1169
          %v1173 = vmul.f32 %v1165, %v1171
          %1175 = vset.pattern.permute.xlu0 0
          %1176 = vperm.xlu0 %1175, %v1162
          %v1177 = vpop.permute.xlu0 %1176
          %1180 = vset.pattern.permute.xlu0 0
          %1181 = vperm.xlu0 %1180, %v1163
          %v1182 = vpop.permute.xlu0 %1181
          %v1184 = vsub.f32 %v986, %v1177
          %v1185 = vsub.f32 %v987, %v1177
          %v1186 = vsub.f32 %v988, %v1177
          %v1187 = vsub.f32 %v989, %v1177
          %v1188 = vsub.f32 %v990, %v1177
          %v1189 = vsub.f32 %v991, %v1177
          %v1190 = vsub.f32 %v992, %v1177
          %v1191 = vsub.f32 %v993, %v1177
          %v1192 = vsub.f32 %v994, %v1177
          %v1193 = vsub.f32 %v995, %v1177
          %v1194 = vsub.f32 %v996, %v1177
          %v1195 = vsub.f32 %v997, %v1177
          %v1196 = vsub.f32 %v998, %v1177
          %v1197 = vsub.f32 %v999, %v1177
          %v1198 = vsub.f32 %v1000, %v1177
          %v1199 = vsub.f32 %v1001, %v1177
          %v1200 = vsub.f32 %v1002, %v1177
          %v1201 = vsub.f32 %v1003, %v1177
          %v1202 = vsub.f32 %v1004, %v1177
          %v1203 = vsub.f32 %v1005, %v1177
          %v1204 = vsub.f32 %v1006, %v1177
          %v1205 = vsub.f32 %v1007, %v1177
          %v1206 = vsub.f32 %v1008, %v1177
          %v1207 = vsub.f32 %v1009, %v1177
          %v1208 = vsub.f32 %v1010, %v1177
          %v1209 = vsub.f32 %v1011, %v1177
          %v1210 = vsub.f32 %v1012, %v1177
          %v1211 = vsub.f32 %v1013, %v1177
          %v1212 = vsub.f32 %v1014, %v1177
          %v1213 = vsub.f32 %v1015, %v1177
          %v1214 = vsub.f32 %v1016, %v1177
          %v1215 = vsub.f32 %v1017, %v1177
          %v1216 = vsub.f32 %v1018, %v1177
          %v1217 = vsub.f32 %v1019, %v1177
          %v1218 = vsub.f32 %v1020, %v1177
          %v1219 = vsub.f32 %v1021, %v1177
          %v1220 = vsub.f32 %v1022, %v1177
          %v1221 = vsub.f32 %v1023, %v1177
          %v1222 = vsub.f32 %v1024, %v1177
          %v1223 = vsub.f32 %v1025, %v1177
          %v1224 = vsub.f32 %v1026, %v1177
          %v1225 = vsub.f32 %v1027, %v1177
          %v1226 = vsub.f32 %v1028, %v1177
          %v1227 = vsub.f32 %v1029, %v1182
          %v1228 = vsub.f32 %v1030, %v1182
          %v1229 = vsub.f32 %v1031, %v1182
          %v1230 = vsub.f32 %v1032, %v1182
          %v1231 = vsub.f32 %v1033, %v1182
          %v1232 = vsub.f32 %v1034, %v1182
          %v1233 = vsub.f32 %v1035, %v1182
          %v1234 = vsub.f32 %v1036, %v1182
          %v1235 = vsub.f32 %v1037, %v1182
          %v1236 = vsub.f32 %v1038, %v1182
          %v1237 = vsub.f32 %v1039, %v1182
          %v1238 = vsub.f32 %v1040, %v1182
          %v1239 = vsub.f32 %v1041, %v1182
          %v1240 = vsub.f32 %v1042, %v1182
          %v1241 = vsub.f32 %v1043, %v1182
          %v1242 = vsub.f32 %v1044, %v1182
          %v1243 = vsub.f32 %v1045, %v1182
          %v1244 = vsub.f32 %v1046, %v1182
          %v1245 = vsub.f32 %v1047, %v1182
          %v1246 = vsub.f32 %v1048, %v1182
          %v1247 = vsub.f32 %v1049, %v1182
          %v1248 = vsub.f32 %v1050, %v1182
          %v1249 = vsub.f32 %v1051, %v1182
          %v1250 = vsub.f32 %v1052, %v1182
          %v1251 = vsub.f32 %v1053, %v1182
          %v1252 = vsub.f32 %v1054, %v1182
          %v1253 = vsub.f32 %v1055, %v1182
          %v1254 = vsub.f32 %v1056, %v1182
          %v1255 = vsub.f32 %v1057, %v1182
          %v1256 = vsub.f32 %v1058, %v1182
          %v1257 = vsub.f32 %v1059, %v1182
          %v1258 = vsub.f32 %v1060, %v1182
          %v1259 = vsub.f32 %v1061, %v1182
          %v1260 = vsub.f32 %v1062, %v1182
          %v1261 = vsub.f32 %v1063, %v1182
          %v1262 = vsub.f32 %v1064, %v1182
          %v1263 = vsub.f32 %v1065, %v1182
          %v1264 = vsub.f32 %v1066, %v1182
          %v1265 = vsub.f32 %v1067, %v1182
          %v1266 = vsub.f32 %v1068, %v1182
          %v1267 = vsub.f32 %v1069, %v1182
          %v1268 = vsub.f32 %v1070, %v1182
          %v1269 = vsub.f32 %v1071, %v1182
          %v1270 = vmul.f32 %v1184, 1.442695
          %v1271 = vpow.pop %v1270
          %v1272 = vmul.f32 %v1185, 1.442695
          %v1273 = vpow.pop %v1272
          %v1274 = vmul.f32 %v1186, 1.442695
          %v1275 = vpow.pop %v1274
          %v1276 = vmul.f32 %v1187, 1.442695
          %v1277 = vpow.pop %v1276
          %v1278 = vmul.f32 %v1188, 1.442695
          %v1279 = vpow.pop %v1278
          %v1280 = vmul.f32 %v1189, 1.442695
          %v1281 = vpow.pop %v1280
          %v1282 = vmul.f32 %v1190, 1.442695
          %v1283 = vpow.pop %v1282
          %v1284 = vmul.f32 %v1191, 1.442695
          %v1285 = vpow.pop %v1284
          %v1286 = vmul.f32 %v1192, 1.442695
          %v1287 = vpow.pop %v1286
          %v1288 = vmul.f32 %v1193, 1.442695
          %v1289 = vpow.pop %v1288
          %v1290 = vmul.f32 %v1194, 1.442695
          %v1291 = vpow.pop %v1290
          %v1292 = vmul.f32 %v1195, 1.442695
          %v1293 = vpow.pop %v1292
          %v1294 = vmul.f32 %v1196, 1.442695
          %v1295 = vpow.pop %v1294
          %v1296 = vmul.f32 %v1197, 1.442695
          %v1297 = vpow.pop %v1296
          %v1298 = vmul.f32 %v1198, 1.442695
          %v1299 = vpow.pop %v1298
          %v1300 = vmul.f32 %v1199, 1.442695
          %v1301 = vpow.pop %v1300
          %v1302 = vmul.f32 %v1200, 1.442695
          %v1303 = vpow.pop %v1302
          %v1304 = vmul.f32 %v1201, 1.442695
          %v1305 = vpow.pop %v1304
          %v1306 = vmul.f32 %v1202, 1.442695
          %v1307 = vpow.pop %v1306
          %v1308 = vmul.f32 %v1203, 1.442695
          %v1309 = vpow.pop %v1308
          %v1310 = vmul.f32 %v1204, 1.442695
          %v1311 = vpow.pop %v1310
          %v1312 = vmul.f32 %v1205, 1.442695
          %v1313 = vpow.pop %v1312
          %v1314 = vmul.f32 %v1206, 1.442695
          %v1315 = vpow.pop %v1314
          %v1316 = vmul.f32 %v1207, 1.442695
          %v1317 = vpow.pop %v1316
          %v1318 = vmul.f32 %v1208, 1.442695
          %v1319 = vpow.pop %v1318
          %v1320 = vmul.f32 %v1209, 1.442695
          %v1321 = vpow.pop %v1320
          %v1322 = vmul.f32 %v1210, 1.442695
          %v1323 = vpow.pop %v1322
          %v1324 = vmul.f32 %v1211, 1.442695
          %v1325 = vpow.pop %v1324
          %v1326 = vmul.f32 %v1212, 1.442695
          %v1327 = vpow.pop %v1326
          %v1328 = vmul.f32 %v1213, 1.442695
          %v1329 = vpow.pop %v1328
          %v1330 = vmul.f32 %v1214, 1.442695
          %v1331 = vpow.pop %v1330
          %v1332 = vmul.f32 %v1215, 1.442695
          %v1333 = vpow.pop %v1332
          %v1334 = vmul.f32 %v1216, 1.442695
          %v1335 = vpow.pop %v1334
          %v1336 = vmul.f32 %v1217, 1.442695
          %v1337 = vpow.pop %v1336
          %v1338 = vmul.f32 %v1218, 1.442695
          %v1339 = vpow.pop %v1338
          %v1340 = vmul.f32 %v1219, 1.442695
          %v1341 = vpow.pop %v1340
          %v1342 = vmul.f32 %v1220, 1.442695
          %v1343 = vpow.pop %v1342
          %v1344 = vmul.f32 %v1221, 1.442695
          %v1345 = vpow.pop %v1344
          %v1346 = vmul.f32 %v1222, 1.442695
          %v1347 = vpow.pop %v1346
          %v1348 = vmul.f32 %v1223, 1.442695
          %v1349 = vpow.pop %v1348
          %v1350 = vmul.f32 %v1224, 1.442695
          %v1351 = vpow.pop %v1350
          %v1352 = vmul.f32 %v1225, 1.442695
          %v1353 = vpow.pop %v1352
          %v1354 = vmul.f32 %v1226, 1.442695
          %v1355 = vpow.pop %v1354
          %v1356 = vmul.f32 %v1227, 1.442695
          %v1357 = vpow.pop %v1356
          %v1358 = vmul.f32 %v1228, 1.442695
          %v1359 = vpow.pop %v1358
          %v1360 = vmul.f32 %v1229, 1.442695
          %v1361 = vpow.pop %v1360
          %v1362 = vmul.f32 %v1230, 1.442695
          %v1363 = vpow.pop %v1362
          %v1364 = vmul.f32 %v1231, 1.442695
          %v1365 = vpow.pop %v1364
          %v1366 = vmul.f32 %v1232, 1.442695
          %v1367 = vpow.pop %v1366
          %v1368 = vmul.f32 %v1233, 1.442695
          %v1369 = vpow.pop %v1368
          %v1370 = vmul.f32 %v1234, 1.442695
          %v1371 = vpow.pop %v1370
          %v1372 = vmul.f32 %v1235, 1.442695
          %v1373 = vpow.pop %v1372
          %v1374 = vmul.f32 %v1236, 1.442695
          %v1375 = vpow.pop %v1374
          %v1376 = vmul.f32 %v1237, 1.442695
          %v1377 = vpow.pop %v1376
          %v1378 = vmul.f32 %v1238, 1.442695
          %v1379 = vpow.pop %v1378
          %v1380 = vmul.f32 %v1239, 1.442695
          %v1381 = vpow.pop %v1380
          %v1382 = vmul.f32 %v1240, 1.442695
          %v1383 = vpow.pop %v1382
          %v1384 = vmul.f32 %v1241, 1.442695
          %v1385 = vpow.pop %v1384
          %v1386 = vmul.f32 %v1242, 1.442695
          %v1387 = vpow.pop %v1386
          %v1388 = vmul.f32 %v1243, 1.442695
          %v1389 = vpow.pop %v1388
          %v1390 = vmul.f32 %v1244, 1.442695
          %v1391 = vpow.pop %v1390
          %v1392 = vmul.f32 %v1245, 1.442695
          %v1393 = vpow.pop %v1392
          %v1394 = vmul.f32 %v1246, 1.442695
          %v1395 = vpow.pop %v1394
          %v1396 = vmul.f32 %v1247, 1.442695
          %v1397 = vpow.pop %v1396
          %v1398 = vmul.f32 %v1248, 1.442695
          %v1399 = vpow.pop %v1398
          %v1400 = vmul.f32 %v1249, 1.442695
          %v1401 = vpow.pop %v1400
          %v1402 = vmul.f32 %v1250, 1.442695
          %v1403 = vpow.pop %v1402
          %v1404 = vmul.f32 %v1251, 1.442695
          %v1405 = vpow.pop %v1404
          %v1406 = vmul.f32 %v1252, 1.442695
          %v1407 = vpow.pop %v1406
          %v1408 = vmul.f32 %v1253, 1.442695
          %v1409 = vpow.pop %v1408
          %v1410 = vmul.f32 %v1254, 1.442695
          %v1411 = vpow.pop %v1410
          %v1412 = vmul.f32 %v1255, 1.442695
          %v1413 = vpow.pop %v1412
          %v1414 = vmul.f32 %v1256, 1.442695
          %v1415 = vpow.pop %v1414
          %v1416 = vmul.f32 %v1257, 1.442695
          %v1417 = vpow.pop %v1416
          %v1418 = vmul.f32 %v1258, 1.442695
          %v1419 = vpow.pop %v1418
          %v1420 = vmul.f32 %v1259, 1.442695
          %v1421 = vpow.pop %v1420
          %v1422 = vmul.f32 %v1260, 1.442695
          %v1423 = vpow.pop %v1422
          %v1424 = vmul.f32 %v1261, 1.442695
          %v1425 = vpow.pop %v1424
          %v1426 = vmul.f32 %v1262, 1.442695
          %v1427 = vpow.pop %v1426
          %v1428 = vmul.f32 %v1263, 1.442695
          %v1429 = vpow.pop %v1428
          %v1430 = vmul.f32 %v1264, 1.442695
          %v1431 = vpow.pop %v1430
          %v1432 = vmul.f32 %v1265, 1.442695
          %v1433 = vpow.pop %v1432
          %v1434 = vmul.f32 %v1266, 1.442695
          %v1435 = vpow.pop %v1434
          %v1436 = vmul.f32 %v1267, 1.442695
          %v1437 = vpow.pop %v1436
          %v1438 = vmul.f32 %v1268, 1.442695
          %v1439 = vpow.pop %v1438
          %v1440 = vmul.f32 %v1269, 1.442695
          %v1441 = vpow.pop %v1440
          %v1442 = vadd.f32 %v1271, %v1273
          %v1443 = vadd.f32 %v1442, %v1275
          %v1444 = vadd.f32 %v1443, %v1277
          %v1445 = vadd.f32 %v1444, %v1279
          %v1446 = vadd.f32 %v1445, %v1281
          %v1447 = vadd.f32 %v1446, %v1283
          %v1448 = vadd.f32 %v1447, %v1285
          %v1449 = vadd.f32 %v1448, %v1287
          %v1450 = vadd.f32 %v1449, %v1289
          %v1451 = vadd.f32 %v1450, %v1291
          %v1452 = vadd.f32 %v1451, %v1293
          %v1453 = vadd.f32 %v1452, %v1295
          %v1454 = vadd.f32 %v1453, %v1297
          %v1455 = vadd.f32 %v1454, %v1299
          %v1456 = vadd.f32 %v1455, %v1301
          %v1457 = vadd.f32 %v1456, %v1303
          %v1458 = vadd.f32 %v1457, %v1305
          %v1459 = vadd.f32 %v1458, %v1307
          %v1460 = vadd.f32 %v1459, %v1309
          %v1461 = vadd.f32 %v1460, %v1311
          %v1462 = vadd.f32 %v1461, %v1313
          %v1463 = vadd.f32 %v1462, %v1315
          %v1464 = vadd.f32 %v1463, %v1317
          %v1465 = vadd.f32 %v1464, %v1319
          %v1466 = vadd.f32 %v1465, %v1321
          %v1467 = vadd.f32 %v1466, %v1323
          %v1468 = vadd.f32 %v1467, %v1325
          %v1469 = vadd.f32 %v1468, %v1327
          %v1470 = vadd.f32 %v1469, %v1329
          %v1471 = vadd.f32 %v1470, %v1331
          %v1472 = vadd.f32 %v1471, %v1333
          %v1473 = vadd.f32 %v1472, %v1335
          %v1474 = vadd.f32 %v1473, %v1337
          %v1475 = vadd.f32 %v1474, %v1339
          %v1476 = vadd.f32 %v1475, %v1341
          %v1477 = vadd.f32 %v1476, %v1343
          %v1478 = vadd.f32 %v1477, %v1345
          %v1479 = vadd.f32 %v1478, %v1347
          %v1480 = vadd.f32 %v1479, %v1349
          %v1481 = vadd.f32 %v1480, %v1351
          %v1482 = vadd.f32 %v1481, %v1353
          %v1483 = vadd.f32 %v1482, %v1355
          %1484 = vadd.xlane.f32.xlu0 %v1483
          %v1485 = vpop.xlane.xlu0 %1484
          %v1486 = vadd.f32 %v1357, %v1359
          %v1487 = vadd.f32 %v1486, %v1361
          %v1488 = vadd.f32 %v1487, %v1363
          %v1489 = vadd.f32 %v1488, %v1365
          %v1490 = vadd.f32 %v1489, %v1367
          %v1491 = vadd.f32 %v1490, %v1369
          %v1492 = vadd.f32 %v1491, %v1371
          %v1493 = vadd.f32 %v1492, %v1373
          %v1494 = vadd.f32 %v1493, %v1375
          %v1495 = vadd.f32 %v1494, %v1377
          %v1496 = vadd.f32 %v1495, %v1379
          %v1497 = vadd.f32 %v1496, %v1381
          %v1498 = vadd.f32 %v1497, %v1383
          %v1499 = vadd.f32 %v1498, %v1385
          %v1500 = vadd.f32 %v1499, %v1387
          %v1501 = vadd.f32 %v1500, %v1389
          %v1502 = vadd.f32 %v1501, %v1391
          %v1503 = vadd.f32 %v1502, %v1393
          %v1504 = vadd.f32 %v1503, %v1395
          %v1505 = vadd.f32 %v1504, %v1397
          %v1506 = vadd.f32 %v1505, %v1399
          %v1507 = vadd.f32 %v1506, %v1401
          %v1508 = vadd.f32 %v1507, %v1403
          %v1509 = vadd.f32 %v1508, %v1405
          %v1510 = vadd.f32 %v1509, %v1407
          %v1511 = vadd.f32 %v1510, %v1409
          %v1512 = vadd.f32 %v1511, %v1411
          %v1513 = vadd.f32 %v1512, %v1413
          %v1514 = vadd.f32 %v1513, %v1415
          %v1515 = vadd.f32 %v1514, %v1417
          %v1516 = vadd.f32 %v1515, %v1419
          %v1517 = vadd.f32 %v1516, %v1421
          %v1518 = vadd.f32 %v1517, %v1423
          %v1519 = vadd.f32 %v1518, %v1425
          %v1520 = vadd.f32 %v1519, %v1427
          %v1521 = vadd.f32 %v1520, %v1429
          %v1522 = vadd.f32 %v1521, %v1431
          %v1523 = vadd.f32 %v1522, %v1433
          %v1524 = vadd.f32 %v1523, %v1435
          %v1525 = vadd.f32 %v1524, %v1437
          %v1526 = vadd.f32 %v1525, %v1439
          %v1527 = vadd.f32 %v1526, %v1441
          %1528 = vadd.xlane.f32.xlu0 %v1527
          %v1529 = vpop.xlane.xlu0 %1528
          %v1530 = vadd.f32 %v1172, %v1485
          %v1531 = vadd.f32 %v1173, %v1529
          %vm1532 = vcmask 7168
          %1533 = vst.msk [vmem:[#allocation3] sm:$0xff] %vm1532, %v1530
          %1534 = vst.msk [vmem:[#allocation3 + $0x8] sm:$0xff] %vm1532, %v1531
          %1535 = vst.msk [vmem:[#allocation2] sm:$0xff] %vm1532, %v1162
          %1536 = vst.msk [vmem:[#allocation2 + $0x8] sm:$0xff] %vm1532, %v1163
        $region128: #{bio0_autoregressive_criterion.1} parent=111 // pred_fallthru
          _
        %p1537 = scmp.eq.s32.totalorder %s833, 0
        // Predicated region
        $region129: #{bio0_autoregressive_criterion.1} parent=111 // pred_check
          %p1538 = pneg %p1537
        $region130: #{bio0_autoregressive_criterion.1} parent=111 // pred_check_branch
          %1540 = sbr.rel (%p1538) target = $region132
        $region131: #{bio0_autoregressive_criterion.1} parent=111 // pred_region
          %v1541 = vld [vmem:[%s735] sm:$0xff]
          %v1542 = vld [vmem:[%s735 + $0x8] sm:$0xff]
          %v1543 = vld [vmem:[%s735 + $0x10] sm:$0xff]
          %v1544 = vld [vmem:[%s735 + $0x18] sm:$0xff]
          %v1545 = vld [vmem:[%s735 + $0x20] sm:$0xff]
          %v1546 = vld [vmem:[%s735 + $0x28] sm:$0xff]
          %v1547 = vld [vmem:[%s735 + $0x30] sm:$0xff]
          %v1548 = vld [vmem:[%s735 + $0x38] sm:$0xff]
          %v1549 = vld [vmem:[%s735 + $0x40] sm:$0xff]
          %v1550 = vld [vmem:[%s735 + $0x48] sm:$0xff]
          %v1551 = vld [vmem:[%s735 + $0x50] sm:$0xff]
          %v1552 = vld [vmem:[%s735 + $0x58] sm:$0xff]
          %v1553 = vld [vmem:[%s735 + $0x60] sm:$0xff]
          %v1554 = vld [vmem:[%s735 + $0x68] sm:$0xff]
          %v1555 = vld [vmem:[%s735 + $0x70] sm:$0xff]
          %v1556 = vld [vmem:[%s735 + $0x78] sm:$0xff]
          %v1557 = vld [vmem:[%s735 + $0x80] sm:$0xff]
          %v1558 = vld [vmem:[%s735 + $0x88] sm:$0xff]
          %v1559 = vld [vmem:[%s735 + $0x90] sm:$0xff]
          %v1560 = vld [vmem:[%s735 + $0x98] sm:$0xff]
          %v1561 = vld [vmem:[%s735 + $0xa0] sm:$0xff]
          %v1562 = vld [vmem:[%s735 + $0xa8] sm:$0xf]
          %v1563 = vld [vmem:[%s735 + $0xac] sm:$0xff]
          %v1564 = vld [vmem:[%s735 + $0xb4] sm:$0xff]
          %v1565 = vld [vmem:[%s735 + $0xbc] sm:$0xff]
          %v1566 = vld [vmem:[%s735 + $0xc4] sm:$0xff]
          %v1567 = vld [vmem:[%s735 + $0xcc] sm:$0xff]
          %v1568 = vld [vmem:[%s735 + $0xd4] sm:$0xff]
          %v1569 = vld [vmem:[%s735 + $0xdc] sm:$0xff]
          %v1570 = vld [vmem:[%s735 + $0xe4] sm:$0xff]
          %v1571 = vld [vmem:[%s735 + $0xec] sm:$0xff]
          %v1572 = vld [vmem:[%s735 + $0xf4] sm:$0xff]
          %v1573 = vld [vmem:[%s735 + $0xfc] sm:$0xff]
          %v1574 = vld [vmem:[%s735 + $0x104] sm:$0xff]
          %v1575 = vld [vmem:[%s735 + $0x10c] sm:$0xff]
          %v1576 = vld [vmem:[%s735 + $0x114] sm:$0xff]
          %v1577 = vld [vmem:[%s735 + $0x11c] sm:$0xff]
          %v1578 = vld [vmem:[%s735 + $0x124] sm:$0xff]
          %v1579 = vld [vmem:[%s735 + $0x12c] sm:$0xff]
          %v1580 = vld [vmem:[%s735 + $0x134] sm:$0xff]
          %v1581 = vld [vmem:[%s735 + $0x13c] sm:$0xff]
          %v1582 = vld [vmem:[%s735 + $0x144] sm:$0xff]
          %v1583 = vld [vmem:[%s735 + $0x14c] sm:$0xff]
          %v1584 = vld [vmem:[%s735 + $0x154] sm:$0xf]
          %v1585 = vunpack.c.l.bf16 %v1541
          %v1586 = vunpack.c.h.bf16 %v1541
          %v1587 = vunpack.c.l.bf16 %v1542
          %v1588 = vunpack.c.h.bf16 %v1542
          %v1589 = vunpack.c.l.bf16 %v1543
          %v1590 = vunpack.c.h.bf16 %v1543
          %v1591 = vunpack.c.l.bf16 %v1544
          %v1592 = vunpack.c.h.bf16 %v1544
          %v1593 = vunpack.c.l.bf16 %v1545
          %v1594 = vunpack.c.h.bf16 %v1545
          %v1595 = vunpack.c.l.bf16 %v1546
          %v1596 = vunpack.c.h.bf16 %v1546
          %v1597 = vunpack.c.l.bf16 %v1547
          %v1598 = vunpack.c.h.bf16 %v1547
          %v1599 = vunpack.c.l.bf16 %v1548
          %v1600 = vunpack.c.h.bf16 %v1548
          %v1601 = vunpack.c.l.bf16 %v1549
          %v1602 = vunpack.c.h.bf16 %v1549
          %v1603 = vunpack.c.l.bf16 %v1550
          %v1604 = vunpack.c.h.bf16 %v1550
          %v1605 = vunpack.c.l.bf16 %v1551
          %v1606 = vunpack.c.h.bf16 %v1551
          %v1607 = vunpack.c.l.bf16 %v1552
          %v1608 = vunpack.c.h.bf16 %v1552
          %v1609 = vunpack.c.l.bf16 %v1553
          %v1610 = vunpack.c.h.bf16 %v1553
          %v1611 = vunpack.c.l.bf16 %v1554
          %v1612 = vunpack.c.h.bf16 %v1554
          %v1613 = vunpack.c.l.bf16 %v1555
          %v1614 = vunpack.c.h.bf16 %v1555
          %v1615 = vunpack.c.l.bf16 %v1556
          %v1616 = vunpack.c.h.bf16 %v1556
          %v1617 = vunpack.c.l.bf16 %v1557
          %v1618 = vunpack.c.h.bf16 %v1557
          %v1619 = vunpack.c.l.bf16 %v1558
          %v1620 = vunpack.c.h.bf16 %v1558
          %v1621 = vunpack.c.l.bf16 %v1559
          %v1622 = vunpack.c.h.bf16 %v1559
          %v1623 = vunpack.c.l.bf16 %v1560
          %v1624 = vunpack.c.h.bf16 %v1560
          %v1625 = vunpack.c.l.bf16 %v1561
          %v1626 = vunpack.c.h.bf16 %v1561
          %v1627 = vunpack.c.l.bf16 %v1562
          %v1628 = vunpack.c.l.bf16 %v1563
          %v1629 = vunpack.c.h.bf16 %v1563
          %v1630 = vunpack.c.l.bf16 %v1564
          %v1631 = vunpack.c.h.bf16 %v1564
          %v1632 = vunpack.c.l.bf16 %v1565
          %v1633 = vunpack.c.h.bf16 %v1565
          %v1634 = vunpack.c.l.bf16 %v1566
          %v1635 = vunpack.c.h.bf16 %v1566
          %v1636 = vunpack.c.l.bf16 %v1567
          %v1637 = vunpack.c.h.bf16 %v1567
          %v1638 = vunpack.c.l.bf16 %v1568
          %v1639 = vunpack.c.h.bf16 %v1568
          %v1640 = vunpack.c.l.bf16 %v1569
          %v1641 = vunpack.c.h.bf16 %v1569
          %v1642 = vunpack.c.l.bf16 %v1570
          %v1643 = vunpack.c.h.bf16 %v1570
          %v1644 = vunpack.c.l.bf16 %v1571
          %v1645 = vunpack.c.h.bf16 %v1571
          %v1646 = vunpack.c.l.bf16 %v1572
          %v1647 = vunpack.c.h.bf16 %v1572
          %v1648 = vunpack.c.l.bf16 %v1573
          %v1649 = vunpack.c.h.bf16 %v1573
          %v1650 = vunpack.c.l.bf16 %v1574
          %v1651 = vunpack.c.h.bf16 %v1574
          %v1652 = vunpack.c.l.bf16 %v1575
          %v1653 = vunpack.c.h.bf16 %v1575
          %v1654 = vunpack.c.l.bf16 %v1576
          %v1655 = vunpack.c.h.bf16 %v1576
          %v1656 = vunpack.c.l.bf16 %v1577
          %v1657 = vunpack.c.h.bf16 %v1577
          %v1658 = vunpack.c.l.bf16 %v1578
          %v1659 = vunpack.c.h.bf16 %v1578
          %v1660 = vunpack.c.l.bf16 %v1579
          %v1661 = vunpack.c.h.bf16 %v1579
          %v1662 = vunpack.c.l.bf16 %v1580
          %v1663 = vunpack.c.h.bf16 %v1580
          %v1664 = vunpack.c.l.bf16 %v1581
          %v1665 = vunpack.c.h.bf16 %v1581
          %v1666 = vunpack.c.l.bf16 %v1582
          %v1667 = vunpack.c.h.bf16 %v1582
          %v1668 = vunpack.c.l.bf16 %v1583
          %v1669 = vunpack.c.h.bf16 %v1583
          %v1670 = vunpack.c.l.bf16 %v1584
          %v1671 = vld [vmem:[#allocation2] sm:$0xff]
          %v1672 = vld [vmem:[#allocation2 + $0x8] sm:$0xff]
          %v1673 = vmax.f32 %v1585, %v1587
          %v1674 = vmax.f32 %v1586, %v1588
          %v1675 = vmax.f32 %v1673, %v1589
          %v1676 = vmax.f32 %v1674, %v1590
          %v1677 = vmax.f32 %v1675, %v1591
          %v1678 = vmax.f32 %v1676, %v1592
          %v1679 = vmax.f32 %v1677, %v1593
          %v1680 = vmax.f32 %v1678, %v1594
          %v1681 = vmax.f32 %v1679, %v1595
          %v1682 = vmax.f32 %v1680, %v1596
          %v1683 = vmax.f32 %v1681, %v1597
          %v1684 = vmax.f32 %v1682, %v1598
          %v1685 = vmax.f32 %v1683, %v1599
          %v1686 = vmax.f32 %v1684, %v1600
          %v1687 = vmax.f32 %v1685, %v1601
          %v1688 = vmax.f32 %v1686, %v1602
          %v1689 = vmax.f32 %v1687, %v1603
          %v1690 = vmax.f32 %v1688, %v1604
          %v1691 = vmax.f32 %v1689, %v1605
          %v1692 = vmax.f32 %v1690, %v1606
          %v1693 = vmax.f32 %v1691, %v1607
          %v1694 = vmax.f32 %v1692, %v1608
          %v1695 = vmax.f32 %v1693, %v1609
          %v1696 = vmax.f32 %v1694, %v1610
          %v1697 = vmax.f32 %v1695, %v1611
          %v1698 = vmax.f32 %v1696, %v1612
          %v1699 = vmax.f32 %v1697, %v1613
          %v1700 = vmax.f32 %v1698, %v1614
          %v1701 = vmax.f32 %v1699, %v1615
          %v1702 = vmax.f32 %v1700, %v1616
          %v1703 = vmax.f32 %v1701, %v1617
          %v1704 = vmax.f32 %v1702, %v1618
          %v1705 = vmax.f32 %v1703, %v1619
          %v1706 = vmax.f32 %v1704, %v1620
          %v1707 = vmax.f32 %v1705, %v1621
          %v1708 = vmax.f32 %v1706, %v1622
          %v1709 = vmax.f32 %v1707, %v1623
          %v1710 = vmax.f32 %v1708, %v1624
          %v1711 = vmax.f32 %v1709, %v1625
          %v1712 = vmax.f32 %v1710, %v1626
          %v1713 = vmax.f32 %v1711, %v1627
          %v1714 = vmax.f32 %v1713, %v1712
          %1715 = vmax.xlane.f32.xlu0 %v1714
          %v1716 = vpop.xlane.xlu0 %1715
          %v1717 = vmax.f32 %v1628, %v1630
          %v1718 = vmax.f32 %v1629, %v1631
          %v1719 = vmax.f32 %v1717, %v1632
          %v1720 = vmax.f32 %v1718, %v1633
          %v1721 = vmax.f32 %v1719, %v1634
          %v1722 = vmax.f32 %v1720, %v1635
          %v1723 = vmax.f32 %v1721, %v1636
          %v1724 = vmax.f32 %v1722, %v1637
          %v1725 = vmax.f32 %v1723, %v1638
          %v1726 = vmax.f32 %v1724, %v1639
          %v1727 = vmax.f32 %v1725, %v1640
          %v1728 = vmax.f32 %v1726, %v1641
          %v1729 = vmax.f32 %v1727, %v1642
          %v1730 = vmax.f32 %v1728, %v1643
          %v1731 = vmax.f32 %v1729, %v1644
          %v1732 = vmax.f32 %v1730, %v1645
          %v1733 = vmax.f32 %v1731, %v1646
          %v1734 = vmax.f32 %v1732, %v1647
          %v1735 = vmax.f32 %v1733, %v1648
          %v1736 = vmax.f32 %v1734, %v1649
          %v1737 = vmax.f32 %v1735, %v1650
          %v1738 = vmax.f32 %v1736, %v1651
          %v1739 = vmax.f32 %v1737, %v1652
          %v1740 = vmax.f32 %v1738, %v1653
          %v1741 = vmax.f32 %v1739, %v1654
          %v1742 = vmax.f32 %v1740, %v1655
          %v1743 = vmax.f32 %v1741, %v1656
          %v1744 = vmax.f32 %v1742, %v1657
          %v1745 = vmax.f32 %v1743, %v1658
          %v1746 = vmax.f32 %v1744, %v1659
          %v1747 = vmax.f32 %v1745, %v1660
          %v1748 = vmax.f32 %v1746, %v1661
          %v1749 = vmax.f32 %v1747, %v1662
          %v1750 = vmax.f32 %v1748, %v1663
          %v1751 = vmax.f32 %v1749, %v1664
          %v1752 = vmax.f32 %v1750, %v1665
          %v1753 = vmax.f32 %v1751, %v1666
          %v1754 = vmax.f32 %v1752, %v1667
          %v1755 = vmax.f32 %v1753, %v1668
          %v1756 = vmax.f32 %v1754, %v1669
          %v1757 = vmax.f32 %v1755, %v1670
          %v1758 = vmax.f32 %v1757, %v1756
          %1759 = vmax.xlane.f32.xlu0 %v1758
          %v1760 = vpop.xlane.xlu0 %1759
          %v1761 = vmax.f32 %v1671, %v1716
          %v1762 = vmax.f32 %v1672, %v1760
          %v1763 = vld [vmem:[#allocation3] sm:$0xff]
          %v1764 = vld [vmem:[#allocation3 + $0x8] sm:$0xff]
          %v1765 = vsub.f32 %v1671, %v1761
          %v1766 = vsub.f32 %v1672, %v1762
          %v1767 = vmul.f32 %v1765, 1.442695
          %v1768 = vpow.pop %v1767
          %v1769 = vmul.f32 %v1766, 1.442695
          %v1770 = vpow.pop %v1769
          %v1771 = vmul.f32 %v1763, %v1768
          %v1772 = vmul.f32 %v1764, %v1770
          %1774 = vset.pattern.permute.xlu0 0
          %1775 = vperm.xlu0 %1774, %v1761
          %v1776 = vpop.permute.xlu0 %1775
          %1779 = vset.pattern.permute.xlu0 0
          %1780 = vperm.xlu0 %1779, %v1762
          %v1781 = vpop.permute.xlu0 %1780
          %v1783 = vsub.f32 %v1585, %v1776
          %v1784 = vsub.f32 %v1586, %v1776
          %v1785 = vsub.f32 %v1587, %v1776
          %v1786 = vsub.f32 %v1588, %v1776
          %v1787 = vsub.f32 %v1589, %v1776
          %v1788 = vsub.f32 %v1590, %v1776
          %v1789 = vsub.f32 %v1591, %v1776
          %v1790 = vsub.f32 %v1592, %v1776
          %v1791 = vsub.f32 %v1593, %v1776
          %v1792 = vsub.f32 %v1594, %v1776
          %v1793 = vsub.f32 %v1595, %v1776
          %v1794 = vsub.f32 %v1596, %v1776
          %v1795 = vsub.f32 %v1597, %v1776
          %v1796 = vsub.f32 %v1598, %v1776
          %v1797 = vsub.f32 %v1599, %v1776
          %v1798 = vsub.f32 %v1600, %v1776
          %v1799 = vsub.f32 %v1601, %v1776
          %v1800 = vsub.f32 %v1602, %v1776
          %v1801 = vsub.f32 %v1603, %v1776
          %v1802 = vsub.f32 %v1604, %v1776
          %v1803 = vsub.f32 %v1605, %v1776
          %v1804 = vsub.f32 %v1606, %v1776
          %v1805 = vsub.f32 %v1607, %v1776
          %v1806 = vsub.f32 %v1608, %v1776
          %v1807 = vsub.f32 %v1609, %v1776
          %v1808 = vsub.f32 %v1610, %v1776
          %v1809 = vsub.f32 %v1611, %v1776
          %v1810 = vsub.f32 %v1612, %v1776
          %v1811 = vsub.f32 %v1613, %v1776
          %v1812 = vsub.f32 %v1614, %v1776
          %v1813 = vsub.f32 %v1615, %v1776
          %v1814 = vsub.f32 %v1616, %v1776
          %v1815 = vsub.f32 %v1617, %v1776
          %v1816 = vsub.f32 %v1618, %v1776
          %v1817 = vsub.f32 %v1619, %v1776
          %v1818 = vsub.f32 %v1620, %v1776
          %v1819 = vsub.f32 %v1621, %v1776
          %v1820 = vsub.f32 %v1622, %v1776
          %v1821 = vsub.f32 %v1623, %v1776
          %v1822 = vsub.f32 %v1624, %v1776
          %v1823 = vsub.f32 %v1625, %v1776
          %v1824 = vsub.f32 %v1626, %v1776
          %v1825 = vsub.f32 %v1627, %v1776
          %v1826 = vsub.f32 %v1628, %v1781
          %v1827 = vsub.f32 %v1629, %v1781
          %v1828 = vsub.f32 %v1630, %v1781
          %v1829 = vsub.f32 %v1631, %v1781
          %v1830 = vsub.f32 %v1632, %v1781
          %v1831 = vsub.f32 %v1633, %v1781
          %v1832 = vsub.f32 %v1634, %v1781
          %v1833 = vsub.f32 %v1635, %v1781
          %v1834 = vsub.f32 %v1636, %v1781
          %v1835 = vsub.f32 %v1637, %v1781
          %v1836 = vsub.f32 %v1638, %v1781
          %v1837 = vsub.f32 %v1639, %v1781
          %v1838 = vsub.f32 %v1640, %v1781
          %v1839 = vsub.f32 %v1641, %v1781
          %v1840 = vsub.f32 %v1642, %v1781
          %v1841 = vsub.f32 %v1643, %v1781
          %v1842 = vsub.f32 %v1644, %v1781
          %v1843 = vsub.f32 %v1645, %v1781
          %v1844 = vsub.f32 %v1646, %v1781
          %v1845 = vsub.f32 %v1647, %v1781
          %v1846 = vsub.f32 %v1648, %v1781
          %v1847 = vsub.f32 %v1649, %v1781
          %v1848 = vsub.f32 %v1650, %v1781
          %v1849 = vsub.f32 %v1651, %v1781
          %v1850 = vsub.f32 %v1652, %v1781
          %v1851 = vsub.f32 %v1653, %v1781
          %v1852 = vsub.f32 %v1654, %v1781
          %v1853 = vsub.f32 %v1655, %v1781
          %v1854 = vsub.f32 %v1656, %v1781
          %v1855 = vsub.f32 %v1657, %v1781
          %v1856 = vsub.f32 %v1658, %v1781
          %v1857 = vsub.f32 %v1659, %v1781
          %v1858 = vsub.f32 %v1660, %v1781
          %v1859 = vsub.f32 %v1661, %v1781
          %v1860 = vsub.f32 %v1662, %v1781
          %v1861 = vsub.f32 %v1663, %v1781
          %v1862 = vsub.f32 %v1664, %v1781
          %v1863 = vsub.f32 %v1665, %v1781
          %v1864 = vsub.f32 %v1666, %v1781
          %v1865 = vsub.f32 %v1667, %v1781
          %v1866 = vsub.f32 %v1668, %v1781
          %v1867 = vsub.f32 %v1669, %v1781
          %v1868 = vsub.f32 %v1670, %v1781
          %v1869 = vmul.f32 %v1783, 1.442695
          %v1870 = vpow.pop %v1869
          %v1871 = vmul.f32 %v1784, 1.442695
          %v1872 = vpow.pop %v1871
          %v1873 = vmul.f32 %v1785, 1.442695
          %v1874 = vpow.pop %v1873
          %v1875 = vmul.f32 %v1786, 1.442695
          %v1876 = vpow.pop %v1875
          %v1877 = vmul.f32 %v1787, 1.442695
          %v1878 = vpow.pop %v1877
          %v1879 = vmul.f32 %v1788, 1.442695
          %v1880 = vpow.pop %v1879
          %v1881 = vmul.f32 %v1789, 1.442695
          %v1882 = vpow.pop %v1881
          %v1883 = vmul.f32 %v1790, 1.442695
          %v1884 = vpow.pop %v1883
          %v1885 = vmul.f32 %v1791, 1.442695
          %v1886 = vpow.pop %v1885
          %v1887 = vmul.f32 %v1792, 1.442695
          %v1888 = vpow.pop %v1887
          %v1889 = vmul.f32 %v1793, 1.442695
          %v1890 = vpow.pop %v1889
          %v1891 = vmul.f32 %v1794, 1.442695
          %v1892 = vpow.pop %v1891
          %v1893 = vmul.f32 %v1795, 1.442695
          %v1894 = vpow.pop %v1893
          %v1895 = vmul.f32 %v1796, 1.442695
          %v1896 = vpow.pop %v1895
          %v1897 = vmul.f32 %v1797, 1.442695
          %v1898 = vpow.pop %v1897
          %v1899 = vmul.f32 %v1798, 1.442695
          %v1900 = vpow.pop %v1899
          %v1901 = vmul.f32 %v1799, 1.442695
          %v1902 = vpow.pop %v1901
          %v1903 = vmul.f32 %v1800, 1.442695
          %v1904 = vpow.pop %v1903
          %v1905 = vmul.f32 %v1801, 1.442695
          %v1906 = vpow.pop %v1905
          %v1907 = vmul.f32 %v1802, 1.442695
          %v1908 = vpow.pop %v1907
          %v1909 = vmul.f32 %v1803, 1.442695
          %v1910 = vpow.pop %v1909
          %v1911 = vmul.f32 %v1804, 1.442695
          %v1912 = vpow.pop %v1911
          %v1913 = vmul.f32 %v1805, 1.442695
          %v1914 = vpow.pop %v1913
          %v1915 = vmul.f32 %v1806, 1.442695
          %v1916 = vpow.pop %v1915
          %v1917 = vmul.f32 %v1807, 1.442695
          %v1918 = vpow.pop %v1917
          %v1919 = vmul.f32 %v1808, 1.442695
          %v1920 = vpow.pop %v1919
          %v1921 = vmul.f32 %v1809, 1.442695
          %v1922 = vpow.pop %v1921
          %v1923 = vmul.f32 %v1810, 1.442695
          %v1924 = vpow.pop %v1923
          %v1925 = vmul.f32 %v1811, 1.442695
          %v1926 = vpow.pop %v1925
          %v1927 = vmul.f32 %v1812, 1.442695
          %v1928 = vpow.pop %v1927
          %v1929 = vmul.f32 %v1813, 1.442695
          %v1930 = vpow.pop %v1929
          %v1931 = vmul.f32 %v1814, 1.442695
          %v1932 = vpow.pop %v1931
          %v1933 = vmul.f32 %v1815, 1.442695
          %v1934 = vpow.pop %v1933
          %v1935 = vmul.f32 %v1816, 1.442695
          %v1936 = vpow.pop %v1935
          %v1937 = vmul.f32 %v1817, 1.442695
          %v1938 = vpow.pop %v1937
          %v1939 = vmul.f32 %v1818, 1.442695
          %v1940 = vpow.pop %v1939
          %v1941 = vmul.f32 %v1819, 1.442695
          %v1942 = vpow.pop %v1941
          %v1943 = vmul.f32 %v1820, 1.442695
          %v1944 = vpow.pop %v1943
          %v1945 = vmul.f32 %v1821, 1.442695
          %v1946 = vpow.pop %v1945
          %v1947 = vmul.f32 %v1822, 1.442695
          %v1948 = vpow.pop %v1947
          %v1949 = vmul.f32 %v1823, 1.442695
          %v1950 = vpow.pop %v1949
          %v1951 = vmul.f32 %v1824, 1.442695
          %v1952 = vpow.pop %v1951
          %v1953 = vmul.f32 %v1825, 1.442695
          %v1954 = vpow.pop %v1953
          %v1955 = vmul.f32 %v1826, 1.442695
          %v1956 = vpow.pop %v1955
          %v1957 = vmul.f32 %v1827, 1.442695
          %v1958 = vpow.pop %v1957
          %v1959 = vmul.f32 %v1828, 1.442695
          %v1960 = vpow.pop %v1959
          %v1961 = vmul.f32 %v1829, 1.442695
          %v1962 = vpow.pop %v1961
          %v1963 = vmul.f32 %v1830, 1.442695
          %v1964 = vpow.pop %v1963
          %v1965 = vmul.f32 %v1831, 1.442695
          %v1966 = vpow.pop %v1965
          %v1967 = vmul.f32 %v1832, 1.442695
          %v1968 = vpow.pop %v1967
          %v1969 = vmul.f32 %v1833, 1.442695
          %v1970 = vpow.pop %v1969
          %v1971 = vmul.f32 %v1834, 1.442695
          %v1972 = vpow.pop %v1971
          %v1973 = vmul.f32 %v1835, 1.442695
          %v1974 = vpow.pop %v1973
          %v1975 = vmul.f32 %v1836, 1.442695
          %v1976 = vpow.pop %v1975
          %v1977 = vmul.f32 %v1837, 1.442695
          %v1978 = vpow.pop %v1977
          %v1979 = vmul.f32 %v1838, 1.442695
          %v1980 = vpow.pop %v1979
          %v1981 = vmul.f32 %v1839, 1.442695
          %v1982 = vpow.pop %v1981
          %v1983 = vmul.f32 %v1840, 1.442695
          %v1984 = vpow.pop %v1983
          %v1985 = vmul.f32 %v1841, 1.442695
          %v1986 = vpow.pop %v1985
          %v1987 = vmul.f32 %v1842, 1.442695
          %v1988 = vpow.pop %v1987
          %v1989 = vmul.f32 %v1843, 1.442695
          %v1990 = vpow.pop %v1989
          %v1991 = vmul.f32 %v1844, 1.442695
          %v1992 = vpow.pop %v1991
          %v1993 = vmul.f32 %v1845, 1.442695
          %v1994 = vpow.pop %v1993
          %v1995 = vmul.f32 %v1846, 1.442695
          %v1996 = vpow.pop %v1995
          %v1997 = vmul.f32 %v1847, 1.442695
          %v1998 = vpow.pop %v1997
          %v1999 = vmul.f32 %v1848, 1.442695
          %v2000 = vpow.pop %v1999
          %v2001 = vmul.f32 %v1849, 1.442695
          %v2002 = vpow.pop %v2001
          %v2003 = vmul.f32 %v1850, 1.442695
          %v2004 = vpow.pop %v2003
          %v2005 = vmul.f32 %v1851, 1.442695
          %v2006 = vpow.pop %v2005
          %v2007 = vmul.f32 %v1852, 1.442695
          %v2008 = vpow.pop %v2007
          %v2009 = vmul.f32 %v1853, 1.442695
          %v2010 = vpow.pop %v2009
          %v2011 = vmul.f32 %v1854, 1.442695
          %v2012 = vpow.pop %v2011
          %v2013 = vmul.f32 %v1855, 1.442695
          %v2014 = vpow.pop %v2013
          %v2015 = vmul.f32 %v1856, 1.442695
          %v2016 = vpow.pop %v2015
          %v2017 = vmul.f32 %v1857, 1.442695
          %v2018 = vpow.pop %v2017
          %v2019 = vmul.f32 %v1858, 1.442695
          %v2020 = vpow.pop %v2019
          %v2021 = vmul.f32 %v1859, 1.442695
          %v2022 = vpow.pop %v2021
          %v2023 = vmul.f32 %v1860, 1.442695
          %v2024 = vpow.pop %v2023
          %v2025 = vmul.f32 %v1861, 1.442695
          %v2026 = vpow.pop %v2025
          %v2027 = vmul.f32 %v1862, 1.442695
          %v2028 = vpow.pop %v2027
          %v2029 = vmul.f32 %v1863, 1.442695
          %v2030 = vpow.pop %v2029
          %v2031 = vmul.f32 %v1864, 1.442695
          %v2032 = vpow.pop %v2031
          %v2033 = vmul.f32 %v1865, 1.442695
          %v2034 = vpow.pop %v2033
          %v2035 = vmul.f32 %v1866, 1.442695
          %v2036 = vpow.pop %v2035
          %v2037 = vmul.f32 %v1867, 1.442695
          %v2038 = vpow.pop %v2037
          %v2039 = vmul.f32 %v1868, 1.442695
          %v2040 = vpow.pop %v2039
          %v2041 = vadd.f32 %v1870, %v1872
          %v2042 = vadd.f32 %v2041, %v1874
          %v2043 = vadd.f32 %v2042, %v1876
          %v2044 = vadd.f32 %v2043, %v1878
          %v2045 = vadd.f32 %v2044, %v1880
          %v2046 = vadd.f32 %v2045, %v1882
          %v2047 = vadd.f32 %v2046, %v1884
          %v2048 = vadd.f32 %v2047, %v1886
          %v2049 = vadd.f32 %v2048, %v1888
          %v2050 = vadd.f32 %v2049, %v1890
          %v2051 = vadd.f32 %v2050, %v1892
          %v2052 = vadd.f32 %v2051, %v1894
          %v2053 = vadd.f32 %v2052, %v1896
          %v2054 = vadd.f32 %v2053, %v1898
          %v2055 = vadd.f32 %v2054, %v1900
          %v2056 = vadd.f32 %v2055, %v1902
          %v2057 = vadd.f32 %v2056, %v1904
          %v2058 = vadd.f32 %v2057, %v1906
          %v2059 = vadd.f32 %v2058, %v1908
          %v2060 = vadd.f32 %v2059, %v1910
          %v2061 = vadd.f32 %v2060, %v1912
          %v2062 = vadd.f32 %v2061, %v1914
          %v2063 = vadd.f32 %v2062, %v1916
          %v2064 = vadd.f32 %v2063, %v1918
          %v2065 = vadd.f32 %v2064, %v1920
          %v2066 = vadd.f32 %v2065, %v1922
          %v2067 = vadd.f32 %v2066, %v1924
          %v2068 = vadd.f32 %v2067, %v1926
          %v2069 = vadd.f32 %v2068, %v1928
          %v2070 = vadd.f32 %v2069, %v1930
          %v2071 = vadd.f32 %v2070, %v1932
          %v2072 = vadd.f32 %v2071, %v1934
          %v2073 = vadd.f32 %v2072, %v1936
          %v2074 = vadd.f32 %v2073, %v1938
          %v2075 = vadd.f32 %v2074, %v1940
          %v2076 = vadd.f32 %v2075, %v1942
          %v2077 = vadd.f32 %v2076, %v1944
          %v2078 = vadd.f32 %v2077, %v1946
          %v2079 = vadd.f32 %v2078, %v1948
          %v2080 = vadd.f32 %v2079, %v1950
          %v2081 = vadd.f32 %v2080, %v1952
          %v2082 = vadd.f32 %v2081, %v1954
          %2083 = vadd.xlane.f32.xlu0 %v2082
          %v2084 = vpop.xlane.xlu0 %2083
          %v2085 = vadd.f32 %v1956, %v1958
          %v2086 = vadd.f32 %v2085, %v1960
          %v2087 = vadd.f32 %v2086, %v1962
          %v2088 = vadd.f32 %v2087, %v1964
          %v2089 = vadd.f32 %v2088, %v1966
          %v2090 = vadd.f32 %v2089, %v1968
          %v2091 = vadd.f32 %v2090, %v1970
          %v2092 = vadd.f32 %v2091, %v1972
          %v2093 = vadd.f32 %v2092, %v1974
          %v2094 = vadd.f32 %v2093, %v1976
          %v2095 = vadd.f32 %v2094, %v1978
          %v2096 = vadd.f32 %v2095, %v1980
          %v2097 = vadd.f32 %v2096, %v1982
          %v2098 = vadd.f32 %v2097, %v1984
          %v2099 = vadd.f32 %v2098, %v1986
          %v2100 = vadd.f32 %v2099, %v1988
          %v2101 = vadd.f32 %v2100, %v1990
          %v2102 = vadd.f32 %v2101, %v1992
          %v2103 = vadd.f32 %v2102, %v1994
          %v2104 = vadd.f32 %v2103, %v1996
          %v2105 = vadd.f32 %v2104, %v1998
          %v2106 = vadd.f32 %v2105, %v2000
          %v2107 = vadd.f32 %v2106, %v2002
          %v2108 = vadd.f32 %v2107, %v2004
          %v2109 = vadd.f32 %v2108, %v2006
          %v2110 = vadd.f32 %v2109, %v2008
          %v2111 = vadd.f32 %v2110, %v2010
          %v2112 = vadd.f32 %v2111, %v2012
          %v2113 = vadd.f32 %v2112, %v2014
          %v2114 = vadd.f32 %v2113, %v2016
          %v2115 = vadd.f32 %v2114, %v2018
          %v2116 = vadd.f32 %v2115, %v2020
          %v2117 = vadd.f32 %v2116, %v2022
          %v2118 = vadd.f32 %v2117, %v2024
          %v2119 = vadd.f32 %v2118, %v2026
          %v2120 = vadd.f32 %v2119, %v2028
          %v2121 = vadd.f32 %v2120, %v2030
          %v2122 = vadd.f32 %v2121, %v2032
          %v2123 = vadd.f32 %v2122, %v2034
          %v2124 = vadd.f32 %v2123, %v2036
          %v2125 = vadd.f32 %v2124, %v2038
          %v2126 = vadd.f32 %v2125, %v2040
          %2127 = vadd.xlane.f32.xlu0 %v2126
          %v2128 = vpop.xlane.xlu0 %2127
          %v2129 = vadd.f32 %v1771, %v2084
          %v2130 = vadd.f32 %v1772, %v2128
          %vm2131 = vcmask 7168
          %2132 = vst.msk [vmem:[#allocation3] sm:$0xff] %vm2131, %v2129
          %2133 = vst.msk [vmem:[#allocation3 + $0x8] sm:$0xff] %vm2131, %v2130
          %2134 = vst.msk [vmem:[#allocation2] sm:$0xff] %vm2131, %v1761
          %2135 = vst.msk [vmem:[#allocation2 + $0x8] sm:$0xff] %vm2131, %v1762
        $region132: #{bio0_autoregressive_criterion.1} parent=111 // pred_fallthru
          _
        %p2136 = scmp.eq.s32.totalorder %s28, 5
        // Predicated region
        $region133: #{bio0_autoregressive_criterion.1} parent=111 // pred_check
          %p2137 = pneg %p2136
        $region134: #{bio0_autoregressive_criterion.1} parent=111 // pred_check_branch
          %2139 = sbr.rel (%p2137) target = $region136
        $region135: #{bio0_autoregressive_criterion.1} parent=111 // pred_region
          %v2140 = vld [vmem:[%s789] sm:$0xff]
          %v2141 = vld [vmem:[%s789 + $0x8] sm:$0xff]
          %vm2142 = vcmp.ne.s32.totalorder %v2140, 4294967196
          %vm2143 = vcmp.ne.s32.totalorder %v2141, 4294967196
          %v2144 = vld [vmem:[#allocation2] sm:$0xff]
          %v2145 = vld [vmem:[#allocation2 + $0x8] sm:$0xff]
          %v2146 = vld [vmem:[#allocation3] sm:$0xff]
          %v2147 = vld [vmem:[#allocation3 + $0x8] sm:$0xff]
          %v2148 = vlog2.pop %v2146
          %v2149 = vmul.f32 %v2148, 0.6931472
          %v2150 = vlog2.pop %v2147
          %v2151 = vmul.f32 %v2150, 0.6931472
          %v2152 = vadd.f32 %v2144, %v2149
          %v2153 = vadd.f32 %v2145, %v2151
          %v2154 = vld [vmem:[%s801] sm:$0xff]
          %v2155 = vld [vmem:[%s801 + $0x8] sm:$0xff]
          %v2156 = vsub.f32 %v2152, %v2154
          %v2157 = vsub.f32 %v2153, %v2155
          %v2158 = vsel %vm2142, %v2156, 0.0
          %v2159 = vsel %vm2143, %v2157, 0.0
          %vm2160 = vcmask 7168
          %v2161 = vsel %vm2160, %v2158, 0.0
          %v2162 = vsel %vm2160, %v2159, 0.0
          %v2163 = vadd.f32 %v2161, %v2162
          %2164 = vadd.xlane.f32.xlu0 %v2163
          %v2165 = vpop.xlane.xlu0 %2164
          %v2166 = vrot.slane %v2165, 4
          %v2167 = vadd.f32 %v2165, %v2166
          %v2168 = vrot.slane %v2167, 2
          %v2169 = vadd.f32 %v2167, %v2168
          %v2170 = vrot.slane %v2169, 1
          %v2171 = vadd.f32 %v2169, %v2170
          %s2172 = vtos %v2171
          %v2173 = vsel %vm2142, 1, 0
          %v2174 = vsel %vm2143, 1, 0
          %v2175 = vcvt.s32.f32 %v2173
          %v2176 = vcvt.s32.f32 %v2174
          %v2177 = vsel %vm2160, %v2175, 0.0
          %v2178 = vsel %vm2160, %v2176, 0.0
          %v2179 = vadd.f32 %v2177, %v2178
          %2180 = vadd.xlane.f32.xlu0 %v2179
          %v2181 = vpop.xlane.xlu0 %2180
          %v2182 = vrot.slane %v2181, 4
          %v2183 = vadd.f32 %v2181, %v2182
          %v2184 = vrot.slane %v2183, 2
          %v2185 = vadd.f32 %v2183, %v2184
          %v2186 = vrot.slane %v2185, 1
          %v2187 = vadd.f32 %v2185, %v2186
          %s2188 = vtos %v2187
          %v2189 = vlaneseq
          %v2190 = vshrl.u32 %v2189, 7
          %vm2191 = vcmp.eq.s32.totalorder %v2190, 0
          %v2192 = vstv %s2172
          %v2193 = vstv %s2188
          %v2194 = vsel %vm2191, %v2192, %v2193
          %2195 = vst [vmem:[%s823] sm:$0x3] %v2194
        $region136: #{bio0_autoregressive_criterion.1} parent=111 // pred_fallthru
          _
        %p2196 = scmp.lt.s32.totalorder %s27, 1
        %s2197 = scalar_select %p2196, %s27, 1
        %s2198 = smul.addr %s2197, 2
        %s2199 = scalar_lea.vmem %s6, %s2198
        // Predicated region
        $region137: #{bio0_autoregressive_criterion.1} parent=111 // pred_check
          %p2200 = pneg %p193
        $region138: #{bio0_autoregressive_criterion.1} parent=111 // pred_check_branch
          %2202 = sbr.rel (%p2200) target = $region140
        $region139: #{bio0_autoregressive_criterion.1} parent=111 // pred_region
          _
        $region140: #{bio0_autoregressive_criterion.1} parent=111 // pred_fallthru
          _
      $region112: #{bio0_autoregressive_criterion.1} parent=5 // pred_fallthru
        _
      %p2203 = scmp.le.s32.totalorder 2, %s18
      // Predicated region
      $region141: #{bio0_autoregressive_criterion.1} parent=5 // pred_check
        %p2204 = pneg %p2203
      $region142: #{bio0_autoregressive_criterion.1} parent=5 // pred_check_branch
        %2206 = sbr.rel (%p2204) target = $region144
      $region143: #{bio0_autoregressive_criterion.1} parent=5 // pred_region
        %s2207 = ssub.s32 %s18, 2
        // Predicated region
        $region145: #{bio0_autoregressive_criterion.1} parent=143 // pred_check
          %p2208 = pneg %p199
        $region146: #{bio0_autoregressive_criterion.1} parent=143 // pred_check_branch
          %2210 = sbr.rel (%p2208) target = $region148
        $region147: #{bio0_autoregressive_criterion.1} parent=143 // pred_region
          %p2211 = scmp.lt.s32.totalorder %s29, 1
          %s2212 = scalar_select %p2211, %s29, 1
          %s2213 = smul.addr %s2212, 2
          %s2214 = scalar_lea.vmem %s6, %s2213
        $region148: #{bio0_autoregressive_criterion.1} parent=143 // pred_fallthru
          _
      $region144: #{bio0_autoregressive_criterion.1} parent=5 // pred_fallthru
        _
    $region6: #{bio0_autoregressive_criterion.1} parent=1 // loop_footer
      %s22 = sadd.s32 1, %s18
    $region7: #{bio0_autoregressive_criterion.1} parent=1 // loop_footer_branch
      %17 = sbr.rel target = $region3
    $region8: #{bio0_autoregressive_criterion.1} parent=1 // loop_exit
      _

</llo_original>
